<compile_context>
chip_gen: v5e
topology: v5e:2x2
jax: 0.10.0
libtpu: 0.0.40
codegen_flags: <defaults>
</compile_context>

<pallas_src>
import functools

import jax
import jax.numpy as jnp
from jax import lax
from jax.experimental import pallas as pl
from jax.experimental.pallas import tpu as pltpu


# ---------------------------------------------------------------------------
# Fused kernel: conv3x3 -> BN -> ReLU -> conv3x3 -> BN -> +x -> ReLU
# ---------------------------------------------------------------------------
def _basic_block_kernel(x_ref, w1_ref, b1_ref, w2_ref, b2_ref, o_ref, *, H):
    """One grid step = NB images, lane-dense layout.

    x_ref : (NB*H, WC)   stacked image rows; lanes = w*C + c
    w*_ref: (3*WC, WC)   K-stacked banded conv weights (BN scale folded in), bf16
    b*_ref: (1, WC)      folded BatchNorm bias, tiled across w, f32
    o_ref : (NB*H, WC)   output slab
    """
    M, WC = x_ref.shape

    # Row index within each image (images are stacked H rows apart); used to
    # zero the dy=-1 / dy=+1 taps at the top/bottom image borders.
    row_idx = lax.broadcasted_iota(jnp.int32, (M, WC), 0)
    if H & (H - 1) == 0:          # power-of-two H: cheap bitwise mask
        rm = row_idx & (H - 1)
    else:
        rm = row_idx % H
    m_top = rm == 0
    m_bot = rm == H - 1

    def im2col(a):
        """(M, WC) -> (M, 3*WC): [row r-1 | row r | row r+1] per output row."""
        zrow = jnp.zeros((1, WC), a.dtype)
        up = jnp.concatenate([zrow, a[:-1, :]], axis=0)    # row r-1
        dn = jnp.concatenate([a[1:, :], zrow], axis=0)     # row r+1
        up = jnp.where(m_top, jnp.zeros_like(a), up)       # top image border
        dn = jnp.where(m_bot, jnp.zeros_like(a), dn)       # bottom image border
        return jnp.concatenate([up, a, dn], axis=-1)       # (M, 3*WC)

    x = x_ref[...]                                         # (M, WC) f32 residual

    # --- conv1 (BN1 scale folded into weights) -> +bias -> ReLU --------------
    col1 = im2col(x).astype(jnp.bfloat16)                  # bf16 MXU operands
    h = jnp.dot(col1, w1_ref[...], preferred_element_type=jnp.float32)
    h = jnp.maximum(h + b1_ref[...], 0.0)                  # f32 epilogue

    # --- conv2 (BN2 scale folded) -> +bias -> +residual -> ReLU --------------
    col2 = im2col(h).astype(jnp.bfloat16)
    y = jnp.dot(col2, w2_ref[...], preferred_element_type=jnp.float32)
    y = jnp.maximum(y + b2_ref[...] + x, 0.0)
    o_ref[...] = y.astype(o_ref.dtype)


# ---------------------------------------------------------------------------
# Wrapper glue: layout transforms, banded/stacked weights, BlockSpecs
# ---------------------------------------------------------------------------
def _banded_conv_weights(w_hwio, W):
    """(3, 3, Cin, Cout) -> (3, W*Cin, W*Cout) block-tridiagonal matrices.

    M[dy, w_in*Cin + ci, w_out*Cout + co] = w[dy, w_in - w_out + 1, ci, co]
    for |w_in - w_out| <= 1, else 0.  Folds the dx taps and the channel
    contraction into one matmul per dy; the width-boundary padding is handled
    by the band structure itself.
    """
    w_in = jnp.arange(W)[:, None]
    w_out = jnp.arange(W)[None, :]
    dx = w_in - w_out + 1
    valid = ((dx >= 0) & (dx <= 2)).astype(w_hwio.dtype)
    dx_c = jnp.clip(dx, 0, 2)
    blk = w_hwio[:, dx_c, :, :] * valid[None, :, :, None, None]   # (3,W,W,Ci,Co)
    Cin, Cout = w_hwio.shape[2], w_hwio.shape[3]
    return blk.transpose(0, 1, 3, 2, 4).reshape(3, W * Cin, W * Cout)


def _stacked_weights(w_hwio, scale, W):
    """Banded weight with BN scale folded into the output channels, stacked
    along K for the single im2col matmul: (3*W*Cin, W*Cout), bf16."""
    wb = _banded_conv_weights(w_hwio, W)                   # (3, WC, WC) f32
    wb = wb * jnp.tile(scale, W)[None, None, :]            # fold BN scale
    k, wc_in, wc_out = wb.shape
    return wb.reshape(k * wc_in, wc_out).astype(jnp.bfloat16)


def basic_block_forward(x_nchw, params, *, nb_max=8):
    """Full BasicBlock forward (stride=1, identity downsample), NCHW in/out."""
    N, C, H, W = x_nchw.shape
    WC = W * C
    # Images per grid step: largest divisor of N that is <= nb_max.
    nb = max(d for d in range(1, min(nb_max, N) + 1) if N % d == 0)
    M = nb * H
    assert WC % 128 == 0 and M % 8 == 0, "toy-size lane-dense layout assumptions"

    # Layout glue: NCHW -> NHWC -> lane-dense 2-D slab (N*H, W*C)
    x2d = jnp.transpose(x_nchw, (0, 2, 3, 1)).reshape(N * H, WC)

    # Parameter preprocessing (tiny, wrapper-side glue)
    w1k = _stacked_weights(params["w1"], params["s1"], W)  # (3*WC, WC) bf16
    w2k = _stacked_weights(params["w2"], params["s2"], W)
    b1 = jnp.tile(params["b1"], W)[None, :]                # (1, WC) f32
    b2 = jnp.tile(params["b2"], W)[None, :]

    out2d = pl.pallas_call(
        functools.partial(_basic_block_kernel, H=H),
        out_shape=jax.ShapeDtypeStruct((N * H, WC), x2d.dtype),
        grid=(N // nb,),
        in_specs=[
            pl.BlockSpec((M, WC), lambda n: (n, 0)),
            pl.BlockSpec((3 * WC, WC), lambda n: (0, 0)),
            pl.BlockSpec((1, WC), lambda n: (0, 0)),
            pl.BlockSpec((3 * WC, WC), lambda n: (0, 0)),
            pl.BlockSpec((1, WC), lambda n: (0, 0)),
        ],
        out_specs=pl.BlockSpec((M, WC), lambda n: (n, 0)),
        compiler_params=pltpu.CompilerParams(
            dimension_semantics=("parallel",)),
    )(x2d, w1k, b1, w2k, b2)

    # Layout glue back: (N*H, W*C) -> NHWC -> NCHW
    return jnp.transpose(out2d.reshape(N, H, W, C), (0, 3, 1, 2))


# ---------------------------------------------------------------------------
# Parameter init (deterministic, synthetic) + pure-JAX reference
# ---------------------------------------------------------------------------
def fold_bn(gamma, beta, mean, var, eps=1e-5):
    scale = gamma / jnp.sqrt(var + eps)
    bias = beta - mean * scale
    return scale, bias                                     # per-channel (C,)


def init_params(key, inplanes, planes):
    ks = jax.random.split(key, 10)
    w1 = 0.1 * jax.random.normal(ks[0], (3, 3, inplanes, planes), jnp.float32)
    w2 = 0.1 * jax.random.normal(ks[1], (3, 3, planes, planes), jnp.float32)
    g1 = jax.random.uniform(ks[2], (planes,), jnp.float32, 0.5, 1.5)
    be1 = 0.1 * jax.random.normal(ks[3], (planes,), jnp.float32)
    m1 = 0.1 * jax.random.normal(ks[4], (planes,), jnp.float32)
    v1 = jax.random.uniform(ks[5], (planes,), jnp.float32, 0.5, 1.5)
    g2 = jax.random.uniform(ks[6], (planes,), jnp.float32, 0.5, 1.5)
    be2 = 0.1 * jax.random.normal(ks[7], (planes,), jnp.float32)
    m2 = 0.1 * jax.random.normal(ks[8], (planes,), jnp.float32)
    v2 = jax.random.uniform(ks[9], (planes,), jnp.float32, 0.5, 1.5)
    s1, b1 = fold_bn(g1, be1, m1, v1)
    s2, b2 = fold_bn(g2, be2, m2, v2)
    return {"w1": w1, "s1": s1, "b1": b1, "w2": w2, "s2": s2, "b2": b2}


def reference_forward(x_nchw, params):
    """Pure-JAX reference (NCHW, lax conv), precision pinned to true f32."""
    dn = ("NCHW", "HWIO", "NCHW")
    prec = lax.Precision.HIGHEST
    h = lax.conv_general_dilated(x_nchw, params["w1"], (1, 1), "SAME",
                                 dimension_numbers=dn, precision=prec)
    h = jnp.maximum(h * params["s1"][None, :, None, None]
                    + params["b1"][None, :, None, None], 0.0)
    o = lax.conv_general_dilated(h, params["w2"], (1, 1), "SAME",
                                 dimension_numbers=dn, precision=prec)
    o = (o * params["s2"][None, :, None, None]
         + params["b2"][None, :, None, None] + x_nchw)
    return jnp.maximum(o, 0.0)


# ---------------------------------------------------------------------------
if __name__ == "__main__":
    # BasicBlock(inplanes=8, planes=8, stride=1, downsample=None).
    # C=8, W=16 -> lane dim W*C = 128 (fully lane-dense).  Batch 16 runs as
    # 2 grid steps of 8 images each, so the matmul M = 8*16 = 128 per step.
    N, C, H, W = 16, 8, 16, 16
    key = jax.random.PRNGKey(0)
    kx, kp = jax.random.split(key)
    x = jax.random.normal(kx, (N, C, H, W), jnp.float32)   # NCHW, like PyTorch
    params = init_params(kp, C, C)

    out = jax.block_until_ready(jax.jit(basic_block_forward)(x, params))
    ref = jax.block_until_ready(reference_forward(x, params))

    assert out.shape == (N, C, H, W)
    # Kernel matmul operands are bf16 (f32 accumulate/epilogue); tolerance is
    # sized for two 72-term bf16-operand contractions vs the f32-HIGHEST
    # reference (observed error is a few 1e-3).
    max_err = float(jnp.max(jnp.abs(out - ref)))
    assert jnp.allclose(out, ref, rtol=2e-2, atol=2e-2), f"mismatch vs ref: {max_err}"

    print("KERNEL_OK")
</pallas_src>

<mosaic_0001>
module attributes {stable_mosaic.version = 11 : i64} {
  func.func @_basic_block_kernel(%arg0: i32, %arg1: memref<128x128xf32, #tpu.memory_space<vmem>>, %arg2: memref<384x128xbf16, #tpu.memory_space<vmem>>, %arg3: memref<1x128xf32, #tpu.memory_space<vmem>>, %arg4: memref<384x128xbf16, #tpu.memory_space<vmem>>, %arg5: memref<1x128xf32, #tpu.memory_space<vmem>>, %arg6: memref<128x128xf32, #tpu.memory_space<vmem>>) attributes {dimension_semantics = [#tpu.dimension_semantics<parallel>], iteration_bounds = array<i64: 2>, scalar_prefetch = 0 : i64, scratch_operands = 0 : i64, tpu.core_type = #tpu.core_type<tc>, window_params = [{transform_indices = @transform_0, window_bounds = array<i64: 128, 128>}, {pipeline_mode = #tpu.pipeline_mode<synchronous>, transform_indices = @transform_1, window_bounds = array<i64: 384, 128>}, {pipeline_mode = #tpu.pipeline_mode<synchronous>, transform_indices = @transform_2, window_bounds = array<i64: 1, 128>}, {pipeline_mode = #tpu.pipeline_mode<synchronous>, transform_indices = @transform_3, window_bounds = array<i64: 384, 128>}, {pipeline_mode = #tpu.pipeline_mode<synchronous>, transform_indices = @transform_4, window_bounds = array<i64: 1, 128>}, {transform_indices = @transform_5, window_bounds = array<i64: 128, 128>}]} {
    %0 = tpu.iota {dimensions = array<i32: 0>} : vector<128x128xi32>
    %c15_i32 = arith.constant 15 : i32
    %1 = vector.broadcast %c15_i32 : i32 to vector<128x128xi32>
    %2 = arith.andi %0, %1 : vector<128x128xi32>
    %c0_i32 = arith.constant 0 : i32
    %3 = vector.broadcast %c0_i32 : i32 to vector<128x128xi32>
    %4 = arith.cmpi eq, %2, %3 : vector<128x128xi32>
    %c15_i32_0 = arith.constant 15 : i32
    %5 = vector.broadcast %c15_i32_0 : i32 to vector<128x128xi32>
    %6 = arith.cmpi eq, %2, %5 : vector<128x128xi32>
    %c0 = arith.constant 0 : index
    %c0_1 = arith.constant 0 : index
    %7 = vector.load %arg1[%c0, %c0_1] : memref<128x128xf32, #tpu.memory_space<vmem>>, vector<128x128xf32>
    %cst = arith.constant 0.000000e+00 : f32
    %8 = vector.broadcast %cst : f32 to vector<1x128xf32>
    %9 = vector.extract_strided_slice %7 {offsets = [0, 0], sizes = [127, 128], strides = [1, 1]} : vector<128x128xf32> to vector<127x128xf32>
    %10 = tpu.concatenate %8, %9 in 0 : vector<1x128xf32>, vector<127x128xf32> -> vector<128x128xf32>
    %11 = vector.extract_strided_slice %7 {offsets = [1, 0], sizes = [127, 128], strides = [1, 1]} : vector<128x128xf32> to vector<127x128xf32>
    %12 = tpu.concatenate %11, %8 in 0 : vector<127x128xf32>, vector<1x128xf32> -> vector<128x128xf32>
    %cst_2 = arith.constant 0.000000e+00 : f32
    %13 = vector.broadcast %cst_2 : f32 to vector<128x128xf32>
    %14 = arith.select %4, %13, %10 : vector<128x128xi1>, vector<128x128xf32>
    %cst_3 = arith.constant 0.000000e+00 : f32
    %15 = vector.broadcast %cst_3 : f32 to vector<128x128xf32>
    %16 = arith.select %6, %15, %12 : vector<128x128xi1>, vector<128x128xf32>
    %17 = tpu.concatenate %14, %7, %16 in 1 : vector<128x128xf32>, vector<128x128xf32>, vector<128x128xf32> -> vector<128x384xf32>
    %18 = arith.truncf %17 : vector<128x384xf32> to vector<128x384xbf16>
    %c0_4 = arith.constant 0 : index
    %c0_5 = arith.constant 0 : index
    %19 = vector.load %arg2[%c0_4, %c0_5] : memref<384x128xbf16, #tpu.memory_space<vmem>>, vector<384x128xbf16>
    %cst_6 = arith.constant dense<0.000000e+00> : vector<128x128xf32>
    %20 = tpu.matmul %18, %19, %cst_6 {dimension_numbers = #tpu.dot_dimension_numbers<[1], [0], [0], [1], [0, 0, 1, 1], [], []>} : vector<128x384xbf16>, vector<384x128xbf16>, vector<128x128xf32> -> vector<128x128xf32>
    %c0_7 = arith.constant 0 : index
    %c0_8 = arith.constant 0 : index
    %21 = vector.load %arg3[%c0_7, %c0_8] : memref<1x128xf32, #tpu.memory_space<vmem>>, vector<1x128xf32>
    %22 = vector.broadcast %21 : vector<1x128xf32> to vector<128x128xf32>
    %23 = arith.addf %20, %22 : vector<128x128xf32>
    %cst_9 = arith.constant 0.000000e+00 : f32
    %24 = vector.broadcast %cst_9 : f32 to vector<128x128xf32>
    %25 = arith.maximumf %23, %24 : vector<128x128xf32>
    %cst_10 = arith.constant 0.000000e+00 : f32
    %26 = vector.broadcast %cst_10 : f32 to vector<1x128xf32>
    %27 = vector.extract_strided_slice %25 {offsets = [0, 0], sizes = [127, 128], strides = [1, 1]} : vector<128x128xf32> to vector<127x128xf32>
    %28 = tpu.concatenate %26, %27 in 0 : vector<1x128xf32>, vector<127x128xf32> -> vector<128x128xf32>
    %29 = vector.extract_strided_slice %25 {offsets = [1, 0], sizes = [127, 128], strides = [1, 1]} : vector<128x128xf32> to vector<127x128xf32>
    %30 = tpu.concatenate %29, %26 in 0 : vector<127x128xf32>, vector<1x128xf32> -> vector<128x128xf32>
    %cst_11 = arith.constant 0.000000e+00 : f32
    %31 = vector.broadcast %cst_11 : f32 to vector<128x128xf32>
    %32 = arith.select %4, %31, %28 : vector<128x128xi1>, vector<128x128xf32>
    %cst_12 = arith.constant 0.000000e+00 : f32
    %33 = vector.broadcast %cst_12 : f32 to vector<128x128xf32>
    %34 = arith.select %6, %33, %30 : vector<128x128xi1>, vector<128x128xf32>
    %35 = tpu.concatenate %32, %25, %34 in 1 : vector<128x128xf32>, vector<128x128xf32>, vector<128x128xf32> -> vector<128x384xf32>
    %36 = arith.truncf %35 : vector<128x384xf32> to vector<128x384xbf16>
    %c0_13 = arith.constant 0 : index
    %c0_14 = arith.constant 0 : index
    %37 = vector.load %arg4[%c0_13, %c0_14] : memref<384x128xbf16, #tpu.memory_space<vmem>>, vector<384x128xbf16>
    %cst_15 = arith.constant dense<0.000000e+00> : vector<128x128xf32>
    %38 = tpu.matmul %36, %37, %cst_15 {dimension_numbers = #tpu.dot_dimension_numbers<[1], [0], [0], [1], [0, 0, 1, 1], [], []>} : vector<128x384xbf16>, vector<384x128xbf16>, vector<128x128xf32> -> vector<128x128xf32>
    %c0_16 = arith.constant 0 : index
    %c0_17 = arith.constant 0 : index
    %39 = vector.load %arg5[%c0_16, %c0_17] : memref<1x128xf32, #tpu.memory_space<vmem>>, vector<1x128xf32>
    %40 = vector.broadcast %39 : vector<1x128xf32> to vector<128x128xf32>
    %41 = arith.addf %38, %40 : vector<128x128xf32>
    %42 = arith.addf %41, %7 : vector<128x128xf32>
    %cst_18 = arith.constant 0.000000e+00 : f32
    %43 = vector.broadcast %cst_18 : f32 to vector<128x128xf32>
    %44 = arith.maximumf %42, %43 : vector<128x128xf32>
    %c0_19 = arith.constant 0 : index
    %c0_20 = arith.constant 0 : index
    %45 = vector.load %arg6[%c0_19, %c0_20] : memref<128x128xf32, #tpu.memory_space<vmem>>, vector<128x128xf32>
    tpu.vector_store %arg6[%c0_19, %c0_20], %44 {strides = array<i32>} : memref<128x128xf32, #tpu.memory_space<vmem>>, vector<128x128xf32>,
    return
  }
  func.func @transform_0(%arg0: i32) -> (i32, i32) {
    %c0_i32 = arith.constant 0 : i32
    %c0_i32_0 = arith.constant 0 : i32
    return %arg0, %c0_i32 : i32, i32
  }
  func.func @transform_1(%arg0: i32) -> (i32, i32) {
    %c0_i32 = arith.constant 0 : i32
    %c0_i32_0 = arith.constant 0 : i32
    %c0_i32_1 = arith.constant 0 : i32
    return %c0_i32, %c0_i32_0 : i32, i32
  }
  func.func @transform_2(%arg0: i32) -> (i32, i32) {
    %c0_i32 = arith.constant 0 : i32
    %c0_i32_0 = arith.constant 0 : i32
    %c0_i32_1 = arith.constant 0 : i32
    return %c0_i32, %c0_i32_0 : i32, i32
  }
  func.func @transform_3(%arg0: i32) -> (i32, i32) {
    %c0_i32 = arith.constant 0 : i32
    %c0_i32_0 = arith.constant 0 : i32
    %c0_i32_1 = arith.constant 0 : i32
    return %c0_i32, %c0_i32_0 : i32, i32
  }
  func.func @transform_4(%arg0: i32) -> (i32, i32) {
    %c0_i32 = arith.constant 0 : i32
    %c0_i32_0 = arith.constant 0 : i32
    %c0_i32_1 = arith.constant 0 : i32
    return %c0_i32, %c0_i32_0 : i32, i32
  }
  func.func @transform_5(%arg0: i32) -> (i32, i32) {
    %c0_i32 = arith.constant 0 : i32
    %c0_i32_0 = arith.constant 0 : i32
    return %arg0, %c0_i32 : i32, i32
  }
}

</mosaic_0001>

<llo_original>
// kernel: tile.28
$region0: #{tile.28}
  #allocation0 [shape = 's32[1]{0}', space=sflag, size = 0x4, scoped, tag = 'scoped memory for tile.28']
  %s0 = inlined_call_operand.vmem [shape: f32[8], index: 0, kind: input, shape index: {}]
  %s1 = inlined_call_operand.vmem [shape: f32[16,8], index: 1, kind: output, shape index: {}]
  // Predicated region
  $region2: #{tile.28} parent=0 // pred_check
    _
  $region3: #{tile.28} parent=0 // pred_check_branch
    %3 = sbr.rel (0) target = $region5
  $region4: #{tile.28} parent=0 // pred_region
    _
  $region5: #{tile.28} parent=0 // pred_fallthru
    _
  %v4 = vld [vmem:[%s0] ss:$0 sm:$0xff]
  %5 = vst [vmem:[%s1] sm:$0xff] %v4
  %s6 = scalar_lea.vmem %s1, 8
  %7 = vst [vmem:[%s6] sm:$0xff] %v4

// kernel: mul.29
$region0: #{mul.29}
  %s0 = inlined_call_operand.vmem [shape: f32[16,8], index: 0, kind: input, shape index: {}]
  %s1 = inlined_call_operand.vmem [shape: f32[128], index: 1, kind: output, shape index: {}]
  $region1: #{mul.29} parent=0
    #allocation0 [shape = 'u8[4096]{0}', space=vmem, size = 0x1000, scoped, tag = 'scoped mem for output reshape']
    %v2 = vld [vmem:[%s0] sm:$0x1]
    %vm3 = vcmask 64512
    %4 = vst.msk [vmem:[#allocation0] sm:$0x1] %vm3, %v2
    %s5 = scalar_lea.vmem %s0, 15
    %v6 = vld [vmem:[%s5] sm:$0x1]
    %7 = vrot.lane.b32.xlu0 %v6, 120
    %v8 = vpop.permute.xlu0 %7
    %vm9 = vcmask 1048512
    %10 = vst.msk [vmem:[#allocation0] sm:$0x1] %vm9, %v8
    %s11 = scalar_lea.vmem %s0, 14
    %v12 = vld [vmem:[%s11] sm:$0x1]
    %13 = vrot.lane.b32.xlu0 %v12, 112
    %v14 = vpop.permute.xlu0 %13
    %vm15 = vcmask 982912
    %16 = vst.msk [vmem:[#allocation0] sm:$0x1] %vm15, %v14
    %s17 = scalar_lea.vmem %s0, 13
    %v18 = vld [vmem:[%s17] sm:$0x1]
    %19 = vrot.lane.b32.xlu0 %v18, 104
    %v20 = vpop.permute.xlu0 %19
    %vm21 = vcmask 917312
    %22 = vst.msk [vmem:[#allocation0] sm:$0x1] %vm21, %v20
    %s23 = scalar_lea.vmem %s0, 12
    %v24 = vld [vmem:[%s23] sm:$0x1]
    %25 = vrot.lane.b32.xlu0 %v24, 96
    %v26 = vpop.permute.xlu0 %25
    %vm27 = vcmask 851712
    %28 = vst.msk [vmem:[#allocation0] sm:$0x1] %vm27, %v26
    %s29 = scalar_lea.vmem %s0, 11
    %v30 = vld [vmem:[%s29] sm:$0x1]
    %31 = vrot.lane.b32.xlu0 %v30, 88
    %v32 = vpop.permute.xlu0 %31
    %vm33 = vcmask 786112
    %34 = vst.msk [vmem:[#allocation0] sm:$0x1] %vm33, %v32
    %s35 = scalar_lea.vmem %s0, 10
    %v36 = vld [vmem:[%s35] sm:$0x1]
    %37 = vrot.lane.b32.xlu0 %v36, 80
    %v38 = vpop.permute.xlu0 %37
    %vm39 = vcmask 720512
    %40 = vst.msk [vmem:[#allocation0] sm:$0x1] %vm39, %v38
    %s41 = scalar_lea.vmem %s0, 9
    %v42 = vld [vmem:[%s41] sm:$0x1]
    %43 = vrot.lane.b32.xlu0 %v42, 72
    %v44 = vpop.permute.xlu0 %43
    %vm45 = vcmask 654912
    %46 = vst.msk [vmem:[#allocation0] sm:$0x1] %vm45, %v44
    %s47 = scalar_lea.vmem %s0, 8
    %v48 = vld [vmem:[%s47] sm:$0x1]
    %49 = vrot.lane.b32.xlu0 %v48, 64
    %v50 = vpop.permute.xlu0 %49
    %vm51 = vcmask 589312
    %52 = vst.msk [vmem:[#allocation0] sm:$0x1] %vm51, %v50
    %s53 = scalar_lea.vmem %s0, 7
    %v54 = vld [vmem:[%s53] sm:$0x1]
    %55 = vrot.lane.b32.xlu0 %v54, 56
    %v56 = vpop.permute.xlu0 %55
    %vm57 = vcmask 523712
    %58 = vst.msk [vmem:[#allocation0] sm:$0x1] %vm57, %v56
    %s59 = scalar_lea.vmem %s0, 6
    %v60 = vld [vmem:[%s59] sm:$0x1]
    %61 = vrot.lane.b32.xlu0 %v60, 48
    %v62 = vpop.permute.xlu0 %61
    %vm63 = vcmask 458112
    %64 = vst.msk [vmem:[#allocation0] sm:$0x1] %vm63, %v62
    %s65 = scalar_lea.vmem %s0, 5
    %v66 = vld [vmem:[%s65] sm:$0x1]
    %67 = vrot.lane.b32.xlu0 %v66, 40
    %v68 = vpop.permute.xlu0 %67
    %vm69 = vcmask 392512
    %70 = vst.msk [vmem:[#allocation0] sm:$0x1] %vm69, %v68
    %s71 = scalar_lea.vmem %s0, 4
    %v72 = vld [vmem:[%s71] sm:$0x1]
    %73 = vrot.lane.b32.xlu0 %v72, 32
    %v74 = vpop.permute.xlu0 %73
    %vm75 = vcmask 326912
    %76 = vst.msk [vmem:[#allocation0] sm:$0x1] %vm75, %v74
    %s77 = scalar_lea.vmem %s0, 3
    %v78 = vld [vmem:[%s77] sm:$0x1]
    %79 = vrot.lane.b32.xlu0 %v78, 24
    %v80 = vpop.permute.xlu0 %79
    %vm81 = vcmask 261312
    %82 = vst.msk [vmem:[#allocation0] sm:$0x1] %vm81, %v80
    %s83 = scalar_lea.vmem %s0, 2
    %v84 = vld [vmem:[%s83] sm:$0x1]
    %85 = vrot.lane.b32.xlu0 %v84, 16
    %v86 = vpop.permute.xlu0 %85
    %vm87 = vcmask 195712
    %88 = vst.msk [vmem:[#allocation0] sm:$0x1] %vm87, %v86
    %s89 = scalar_lea.vmem %s0, 1
    %v90 = vld [vmem:[%s89] sm:$0x1]
    %91 = vrot.lane.b32.xlu0 %v90, 8
    %v92 = vpop.permute.xlu0 %91
    %vm93 = vcmask 130112
    %94 = vst.msk [vmem:[#allocation0] sm:$0x1] %vm93, %v92
    %s96 = ssub.s32 2, 1
    %v97 = vld [vmem:[#allocation0] sm:%s96]
    %s99 = ssub.s32 2, 1
    %100 = vst [vmem:[%s1] sm:%s99] %v97

// kernel: tile.34
$region0: #{tile.34}
  %s0 = inlined_call_operand.vmem [shape: f32[16,8], index: 0, kind: input, shape index: {}]
  %s1 = inlined_call_operand.vmem [shape: f32[1,128], index: 1, kind: output, shape index: {}]
  $region1: #{tile.34} parent=0
    #allocation0 [shape = 'u8[4096]{0}', space=vmem, size = 0x1000, scoped, tag = 'scoped mem for output reshape']
    %v2 = vld [vmem:[%s0] sm:$0x1]
    %vm3 = vcmask 64512
    %4 = vst.msk [vmem:[#allocation0] sm:$0x1] %vm3, %v2
    %s5 = scalar_lea.vmem %s0, 15
    %v6 = vld [vmem:[%s5] sm:$0x1]
    %7 = vrot.lane.b32.xlu0 %v6, 120
    %v8 = vpop.permute.xlu0 %7
    %vm9 = vcmask 1048512
    %10 = vst.msk [vmem:[#allocation0] sm:$0x1] %vm9, %v8
    %s11 = scalar_lea.vmem %s0, 14
    %v12 = vld [vmem:[%s11] sm:$0x1]
    %13 = vrot.lane.b32.xlu0 %v12, 112
    %v14 = vpop.permute.xlu0 %13
    %vm15 = vcmask 982912
    %16 = vst.msk [vmem:[#allocation0] sm:$0x1] %vm15, %v14
    %s17 = scalar_lea.vmem %s0, 13
    %v18 = vld [vmem:[%s17] sm:$0x1]
    %19 = vrot.lane.b32.xlu0 %v18, 104
    %v20 = vpop.permute.xlu0 %19
    %vm21 = vcmask 917312
    %22 = vst.msk [vmem:[#allocation0] sm:$0x1] %vm21, %v20
    %s23 = scalar_lea.vmem %s0, 12
    %v24 = vld [vmem:[%s23] sm:$0x1]
    %25 = vrot.lane.b32.xlu0 %v24, 96
    %v26 = vpop.permute.xlu0 %25
    %vm27 = vcmask 851712
    %28 = vst.msk [vmem:[#allocation0] sm:$0x1] %vm27, %v26
    %s29 = scalar_lea.vmem %s0, 11
    %v30 = vld [vmem:[%s29] sm:$0x1]
    %31 = vrot.lane.b32.xlu0 %v30, 88
    %v32 = vpop.permute.xlu0 %31
    %vm33 = vcmask 786112
    %34 = vst.msk [vmem:[#allocation0] sm:$0x1] %vm33, %v32
    %s35 = scalar_lea.vmem %s0, 10
    %v36 = vld [vmem:[%s35] sm:$0x1]
    %37 = vrot.lane.b32.xlu0 %v36, 80
    %v38 = vpop.permute.xlu0 %37
    %vm39 = vcmask 720512
    %40 = vst.msk [vmem:[#allocation0] sm:$0x1] %vm39, %v38
    %s41 = scalar_lea.vmem %s0, 9
    %v42 = vld [vmem:[%s41] sm:$0x1]
    %43 = vrot.lane.b32.xlu0 %v42, 72
    %v44 = vpop.permute.xlu0 %43
    %vm45 = vcmask 654912
    %46 = vst.msk [vmem:[#allocation0] sm:$0x1] %vm45, %v44
    %s47 = scalar_lea.vmem %s0, 8
    %v48 = vld [vmem:[%s47] sm:$0x1]
    %49 = vrot.lane.b32.xlu0 %v48, 64
    %v50 = vpop.permute.xlu0 %49
    %vm51 = vcmask 589312
    %52 = vst.msk [vmem:[#allocation0] sm:$0x1] %vm51, %v50
    %s53 = scalar_lea.vmem %s0, 7
    %v54 = vld [vmem:[%s53] sm:$0x1]
    %55 = vrot.lane.b32.xlu0 %v54, 56
    %v56 = vpop.permute.xlu0 %55
    %vm57 = vcmask 523712
    %58 = vst.msk [vmem:[#allocation0] sm:$0x1] %vm57, %v56
    %s59 = scalar_lea.vmem %s0, 6
    %v60 = vld [vmem:[%s59] sm:$0x1]
    %61 = vrot.lane.b32.xlu0 %v60, 48
    %v62 = vpop.permute.xlu0 %61
    %vm63 = vcmask 458112
    %64 = vst.msk [vmem:[#allocation0] sm:$0x1] %vm63, %v62
    %s65 = scalar_lea.vmem %s0, 5
    %v66 = vld [vmem:[%s65] sm:$0x1]
    %67 = vrot.lane.b32.xlu0 %v66, 40
    %v68 = vpop.permute.xlu0 %67
    %vm69 = vcmask 392512
    %70 = vst.msk [vmem:[#allocation0] sm:$0x1] %vm69, %v68
    %s71 = scalar_lea.vmem %s0, 4
    %v72 = vld [vmem:[%s71] sm:$0x1]
    %73 = vrot.lane.b32.xlu0 %v72, 32
    %v74 = vpop.permute.xlu0 %73
    %vm75 = vcmask 326912
    %76 = vst.msk [vmem:[#allocation0] sm:$0x1] %vm75, %v74
    %s77 = scalar_lea.vmem %s0, 3
    %v78 = vld [vmem:[%s77] sm:$0x1]
    %79 = vrot.lane.b32.xlu0 %v78, 24
    %v80 = vpop.permute.xlu0 %79
    %vm81 = vcmask 261312
    %82 = vst.msk [vmem:[#allocation0] sm:$0x1] %vm81, %v80
    %s83 = scalar_lea.vmem %s0, 2
    %v84 = vld [vmem:[%s83] sm:$0x1]
    %85 = vrot.lane.b32.xlu0 %v84, 16
    %v86 = vpop.permute.xlu0 %85
    %vm87 = vcmask 195712
    %88 = vst.msk [vmem:[#allocation0] sm:$0x1] %vm87, %v86
    %s89 = scalar_lea.vmem %s0, 1
    %v90 = vld [vmem:[%s89] sm:$0x1]
    %91 = vrot.lane.b32.xlu0 %v90, 8
    %v92 = vpop.permute.xlu0 %91
    %vm93 = vcmask 130112
    %94 = vst.msk [vmem:[#allocation0] sm:$0x1] %vm93, %v92
    %s96 = ssub.s32 2, 1
    %v97 = vld [vmem:[#allocation0] sm:%s96]
    %s99 = ssub.s32 2, 1
    %100 = vst [vmem:[%s1] sm:%s99] %v97

// kernel: basic_block_forward.1
$region0: #{basic_block_forward.1}
  #allocation0 [shape = 'u32[]', space=smem, size = 0x4, offset = 0x4, fixed_abs, tag = 'smem constant byte address 0x4 - core index']
  #allocation1 [shape = 'u32[72,128]{1,0:T(1,128)}', space=vmem, size = 0x9000, scoped, tag = 'internal scratch']
  %s0 = inlined_call_operand.vmem [shape: f32[256,128], index: 0, kind: input, shape index: {}]
  %s1 = inlined_call_operand.vmem [shape: bf16[384,128], index: 1, kind: input, shape index: {}]
  %s2 = inlined_call_operand.vmem [shape: f32[1,128], index: 2, kind: input, shape index: {}]
  %s3 = inlined_call_operand.vmem [shape: bf16[384,128], index: 3, kind: input, shape index: {}]
  %s4 = inlined_call_operand.vmem [shape: f32[1,128], index: 4, kind: input, shape index: {}]
  %s5 = inlined_call_operand.vmem [shape: f32[256,128], index: 5, kind: output, shape index: {}]
  %s6 = sld [smem:[#allocation0]]
  $region53: #{basic_block_forward.1} parent=0
    _
  %s8 = ssub.s32 1, %s6
  %s9 = scalar_select 0, %s8, %s6
  loop: start=0, step=1, limit=4
  $region2: #{basic_block_forward.1} parent=0 // loop_pre_header
    _
  $region3: #{basic_block_forward.1} parent=0 // loop_header
    %s11 = sphi 0, %s15
    %p12 = scmp.ge.s32.totalorder %s11, 4
    %s21 = sphi 0, %s23
    %s24 = sphi 0, %s21
    %s25 = sphi 0, %s24
    %s41 = sphi 0, %s25
    %s45 = sphi 0, %s45
    %s47 = sphi 0, %s45
    %s48 = sphi 0, %s47
    %s62 = sphi 0, %s48
    %s66 = sphi 0, %s66
    %s68 = sphi 0, %s66
    %s69 = sphi 0, %s68
    %s83 = sphi 0, %s69
    %s87 = sphi 0, %s87
    %s89 = sphi 0, %s87
    %s90 = sphi 0, %s89
    %s104 = sphi 0, %s90
    %s108 = sphi 0, %s108
    %s110 = sphi 0, %s108
    %s111 = sphi 0, %s110
    %s125 = sphi 0, %s111
    %s131 = sphi 0, %s133
    %s134 = sphi 0, %s131
    %s135 = sphi 0, %s134
    %s151 = sphi 0, %s135
  $region4: #{basic_block_forward.1} parent=0 // loop_header_branch
    %14 = sbr.rel (%p12) target = $region8
  $region5: #{basic_block_forward.1} parent=0 // loop_body
    %s16 = ssub.s32 %s11, 1
    %s17 = ssub.s32 %s11, 2
    %s18 = sadd.s32 %s11, 1
    %s19 = ssub.s32 %s11, %s18
    %p20 = scmp.eq.s32.totalorder %s19, 0
    %s22 = sadd.s32 %s21, 1
    %s23 = scalar_select %p20, %s21, %s22
    %p26 = pneg %p20
    %p27 = scmp.eq.s32.totalorder %s11, 1
    %p28 = por %p26, %p27
    %p29 = scmp.ne.s32.totalorder %s21, %s24
    %p30 = scmp.eq.s32.totalorder %s11, 0
    %p31 = por %p29, %p30
    %p32 = scmp.ne.s32.totalorder %s21, %s24
    %p33 = scmp.eq.s32.totalorder %s16, 1
    %p34 = por %p32, %p33
    %p35 = scmp.ne.s32.totalorder %s24, %s25
    %p36 = scmp.eq.s32.totalorder %s16, 0
    %p37 = por %p35, %p36
    %p38 = scmp.ne.s32.totalorder %s24, %s25
    %p39 = scmp.eq.s32.totalorder %s17, 1
    %p40 = por %p38, %p39
    %p42 = scmp.ne.s32.totalorder %s25, %s41
    %p43 = scmp.eq.s32.totalorder %s17, 0
    %p44 = por %p42, %p43
    %s46 = sadd.s32 %s45, 1
    %p49 = scmp.eq.s32.totalorder %s11, 1
    %p50 = scmp.ne.s32.totalorder %s45, %s47
    %p51 = scmp.eq.s32.totalorder %s11, 0
    %p52 = por %p50, %p51
    %p53 = scmp.ne.s32.totalorder %s45, %s47
    %p54 = scmp.eq.s32.totalorder %s16, 1
    %p55 = por %p53, %p54
    %p56 = scmp.ne.s32.totalorder %s47, %s48
    %p57 = scmp.eq.s32.totalorder %s16, 0
    %p58 = por %p56, %p57
    %p59 = scmp.ne.s32.totalorder %s47, %s48
    %p60 = scmp.eq.s32.totalorder %s17, 1
    %p61 = por %p59, %p60
    %p63 = scmp.ne.s32.totalorder %s48, %s62
    %p64 = scmp.eq.s32.totalorder %s17, 0
    %p65 = por %p63, %p64
    %s67 = sadd.s32 %s66, 1
    %p70 = scmp.eq.s32.totalorder %s11, 1
    %p71 = scmp.ne.s32.totalorder %s66, %s68
    %p72 = scmp.eq.s32.totalorder %s11, 0
    %p73 = por %p71, %p72
    %p74 = scmp.ne.s32.totalorder %s66, %s68
    %p75 = scmp.eq.s32.totalorder %s16, 1
    %p76 = por %p74, %p75
    %p77 = scmp.ne.s32.totalorder %s68, %s69
    %p78 = scmp.eq.s32.totalorder %s16, 0
    %p79 = por %p77, %p78
    %p80 = scmp.ne.s32.totalorder %s68, %s69
    %p81 = scmp.eq.s32.totalorder %s17, 1
    %p82 = por %p80, %p81
    %p84 = scmp.ne.s32.totalorder %s69, %s83
    %p85 = scmp.eq.s32.totalorder %s17, 0
    %p86 = por %p84, %p85
    %s88 = sadd.s32 %s87, 1
    %p91 = scmp.eq.s32.totalorder %s11, 1
    %p92 = scmp.ne.s32.totalorder %s87, %s89
    %p93 = scmp.eq.s32.totalorder %s11, 0
    %p94 = por %p92, %p93
    %p95 = scmp.ne.s32.totalorder %s87, %s89
    %p96 = scmp.eq.s32.totalorder %s16, 1
    %p97 = por %p95, %p96
    %p98 = scmp.ne.s32.totalorder %s89, %s90
    %p99 = scmp.eq.s32.totalorder %s16, 0
    %p100 = por %p98, %p99
    %p101 = scmp.ne.s32.totalorder %s89, %s90
    %p102 = scmp.eq.s32.totalorder %s17, 1
    %p103 = por %p101, %p102
    %p105 = scmp.ne.s32.totalorder %s90, %s104
    %p106 = scmp.eq.s32.totalorder %s17, 0
    %p107 = por %p105, %p106
    %s109 = sadd.s32 %s108, 1
    %p112 = scmp.eq.s32.totalorder %s11, 1
    %p113 = scmp.ne.s32.totalorder %s108, %s110
    %p114 = scmp.eq.s32.totalorder %s11, 0
    %p115 = por %p113, %p114
    %p116 = scmp.ne.s32.totalorder %s108, %s110
    %p117 = scmp.eq.s32.totalorder %s16, 1
    %p118 = por %p116, %p117
    %p119 = scmp.ne.s32.totalorder %s110, %s111
    %p120 = scmp.eq.s32.totalorder %s16, 0
    %p121 = por %p119, %p120
    %p122 = scmp.ne.s32.totalorder %s110, %s111
    %p123 = scmp.eq.s32.totalorder %s17, 1
    %p124 = por %p122, %p123
    %p126 = scmp.ne.s32.totalorder %s111, %s125
    %p127 = scmp.eq.s32.totalorder %s17, 0
    %p128 = por %p126, %p127
    %s129 = ssub.s32 %s11, %s18
    %p130 = scmp.eq.s32.totalorder %s129, 0
    %s132 = sadd.s32 %s131, 1
    %s133 = scalar_select %p130, %s131, %s132
    %p136 = pneg %p130
    %p137 = scmp.eq.s32.totalorder %s11, 1
    %p138 = por %p136, %p137
    %p139 = scmp.ne.s32.totalorder %s131, %s134
    %p140 = scmp.eq.s32.totalorder %s11, 0
    %p141 = por %p139, %p140
    %p142 = scmp.ne.s32.totalorder %s131, %s134
    %p143 = scmp.eq.s32.totalorder %s16, 1
    %p144 = por %p142, %p143
    %p145 = scmp.ne.s32.totalorder %s134, %s135
    %p146 = scmp.eq.s32.totalorder %s16, 0
    %p147 = por %p145, %p146
    %p148 = scmp.ne.s32.totalorder %s134, %s135
    %p149 = scmp.eq.s32.totalorder %s17, 1
    %p150 = por %p148, %p149
    %p152 = scmp.ne.s32.totalorder %s135, %s151
    %p153 = scmp.eq.s32.totalorder %s17, 0
    %p154 = por %p152, %p153
    %p155 = scmp.le.s32.totalorder 1, %s11
    %p156 = scmp.lt.s32.totalorder %s11, 3
    %p157 = pnand %p155, %p156
    %p158 = pneg %p157
    // Predicated region
    $region9: #{basic_block_forward.1} parent=5 // pred_check
      _
    $region10: #{basic_block_forward.1} parent=5 // pred_check_branch
      %160 = sbr.rel (%p157) target = $region12
    $region11: #{basic_block_forward.1} parent=5 // pred_region
      %s161 = ssub.s32 %s11, 1
      // Predicated region
      $region13: #{basic_block_forward.1} parent=11 // pred_check
        %p162 = pneg %p58
      $region14: #{basic_block_forward.1} parent=11 // pred_check_branch
        %164 = sbr.rel (%p162) target = $region16
      $region15: #{basic_block_forward.1} parent=11 // pred_region
        _
      $region16: #{basic_block_forward.1} parent=11 // pred_fallthru
        _
      // Predicated region
      $region17: #{basic_block_forward.1} parent=11 // pred_check
        %p165 = pneg %p79
      $region18: #{basic_block_forward.1} parent=11 // pred_check_branch
        %167 = sbr.rel (%p165) target = $region20
      $region19: #{basic_block_forward.1} parent=11 // pred_region
        _
      $region20: #{basic_block_forward.1} parent=11 // pred_fallthru
        _
      // Predicated region
      $region21: #{basic_block_forward.1} parent=11 // pred_check
        %p168 = pneg %p100
      $region22: #{basic_block_forward.1} parent=11 // pred_check_branch
        %170 = sbr.rel (%p168) target = $region24
      $region23: #{basic_block_forward.1} parent=11 // pred_region
        _
      $region24: #{basic_block_forward.1} parent=11 // pred_fallthru
        _
      // Predicated region
      $region25: #{basic_block_forward.1} parent=11 // pred_check
        %p171 = pneg %p121
      $region26: #{basic_block_forward.1} parent=11 // pred_check_branch
        %173 = sbr.rel (%p171) target = $region28
      $region27: #{basic_block_forward.1} parent=11 // pred_region
        _
      $region28: #{basic_block_forward.1} parent=11 // pred_fallthru
        _
    $region12: #{basic_block_forward.1} parent=5 // pred_fallthru
      _
    %p174 = scmp.lt.s32.totalorder %s11, 2
    // Predicated region
    $region29: #{basic_block_forward.1} parent=5 // pred_check
      %p175 = pneg %p174
    $region30: #{basic_block_forward.1} parent=5 // pred_check_branch
      %177 = sbr.rel (%p175) target = $region32
    $region31: #{basic_block_forward.1} parent=5 // pred_region
      // Predicated region
      $region33: #{basic_block_forward.1} parent=31 // pred_check
        %p178 = pneg %p31
      $region34: #{basic_block_forward.1} parent=31 // pred_check_branch
        %180 = sbr.rel (%p178) target = $region36
      $region35: #{basic_block_forward.1} parent=31 // pred_region
        %s181 = smul.u32 16, %s11
        %p182 = scmp.lt.s32.totalorder %s181, 31
        %s183 = scalar_select %p182, %s181, 31
        %s184 = smul.addr %s183, 8
        %s185 = scalar_lea.vmem %s0, %s184
        %s186 = smul.u32 16, %s11
      $region36: #{basic_block_forward.1} parent=31 // pred_fallthru
        _
    $region32: #{basic_block_forward.1} parent=5 // pred_fallthru
      _
    %p187 = scmp.le.s32.totalorder 1, %s11
    %p188 = scmp.lt.s32.totalorder %s11, 3
    %p189 = pnand %p187, %p188
    %p190 = pneg %p189
    // Predicated region
    $region37: #{basic_block_forward.1} parent=5 // pred_check
      _
    $region38: #{basic_block_forward.1} parent=5 // pred_check_branch
      %192 = sbr.rel (%p189) target = $region40
    $region39: #{basic_block_forward.1} parent=5 // pred_region
      %s193 = ssub.s32 %s11, 1
      %s194 = smul.u32 16, %s16
      %p195 = scmp.lt.s32.totalorder %s194, 31
      %s196 = scalar_select %p195, %s194, 31
      %s197 = smul.addr %s196, 8
      %s198 = scalar_lea.vmem %s0, %s197
      %p199 = pneg %p37
      %p200 = pneg %p34
      %p201 = pneg %p58
      %p202 = pneg %p55
      %p203 = pneg %p79
      %p204 = pneg %p76
      %p205 = pneg %p100
      %p206 = pneg %p97
      %p207 = pneg %p121
      %p208 = pneg %p118
      %p209 = pneg %p147
      %p210 = pneg %p144
      %s211 = smul.u32 16, %s16
      %p212 = scmp.lt.s32.totalorder %s211, 31
      %s213 = scalar_select %p212, %s211, 31
      %s214 = smul.addr %s213, 8
      %s215 = scalar_lea.vmem %s5, %s214
      %s216 = smul.u32 16, %s16
      %p217 = scmp.lt.s32.totalorder %s216, 31
      %s218 = scalar_select %p217, %s216, 31
      %s219 = smul.addr %s218, 8
      %s220 = scalar_lea.vmem %s0, %s219
      %s221 = smul.u32 16, %s16
      %s222 = smul.u32 16, %s16
      %p223 = scmp.lt.s32.totalorder %s222, 31
      %s224 = scalar_select %p223, %s222, 31
      %s225 = smul.addr %s224, 8
      %s226 = scalar_lea.vmem %s5, %s225
      %s227 = smul.u32 16, %s16
      %v228 = vlaneseq
      %v229 = vshrl.u32 %v228, 7
      %v230 = vadd.s32 %v229, 8
      %v231 = vadd.s32 %v229, 16
      %v232 = vadd.s32 %v229, 24
      %v233 = vadd.s32 %v229, 32
      %v234 = vadd.s32 %v229, 40
      %v235 = vadd.s32 %v229, 48
      %v236 = vadd.s32 %v229, 56
      %v237 = vadd.s32 %v229, 64
      %v238 = vadd.s32 %v229, 72
      %v239 = vadd.s32 %v229, 80
      %v240 = vadd.s32 %v229, 88
      %v241 = vadd.s32 %v229, 96
      %v242 = vadd.s32 %v229, 104
      %v243 = vadd.s32 %v229, 112
      %v244 = vadd.s32 %v229, 120
      %v245 = vand.u32 %v229, 15
      %v246 = vand.u32 %v230, 15
      %v247 = vand.u32 %v231, 15
      %v248 = vand.u32 %v232, 15
      %v249 = vand.u32 %v233, 15
      %v250 = vand.u32 %v234, 15
      %v251 = vand.u32 %v235, 15
      %v252 = vand.u32 %v236, 15
      %v253 = vand.u32 %v237, 15
      %v254 = vand.u32 %v238, 15
      %v255 = vand.u32 %v239, 15
      %v256 = vand.u32 %v240, 15
      %v257 = vand.u32 %v241, 15
      %v258 = vand.u32 %v242, 15
      %v259 = vand.u32 %v243, 15
      %v260 = vand.u32 %v244, 15
      %vm261 = vcmp.eq.s32.totalorder %v245, 0
      %vm262 = vcmp.eq.s32.totalorder %v246, 0
      %vm263 = vcmp.eq.s32.totalorder %v247, 0
      %vm264 = vcmp.eq.s32.totalorder %v248, 0
      %vm265 = vcmp.eq.s32.totalorder %v249, 0
      %vm266 = vcmp.eq.s32.totalorder %v250, 0
      %vm267 = vcmp.eq.s32.totalorder %v251, 0
      %vm268 = vcmp.eq.s32.totalorder %v252, 0
      %vm269 = vcmp.eq.s32.totalorder %v253, 0
      %vm270 = vcmp.eq.s32.totalorder %v254, 0
      %vm271 = vcmp.eq.s32.totalorder %v255, 0
      %vm272 = vcmp.eq.s32.totalorder %v256, 0
      %vm273 = vcmp.eq.s32.totalorder %v257, 0
      %vm274 = vcmp.eq.s32.totalorder %v258, 0
      %vm275 = vcmp.eq.s32.totalorder %v259, 0
      %vm276 = vcmp.eq.s32.totalorder %v260, 0
      %vm277 = vcmp.eq.s32.totalorder %v245, 15
      %vm278 = vcmp.eq.s32.totalorder %v246, 15
      %vm279 = vcmp.eq.s32.totalorder %v247, 15
      %vm280 = vcmp.eq.s32.totalorder %v248, 15
      %vm281 = vcmp.eq.s32.totalorder %v249, 15
      %vm282 = vcmp.eq.s32.totalorder %v250, 15
      %vm283 = vcmp.eq.s32.totalorder %v251, 15
      %vm284 = vcmp.eq.s32.totalorder %v252, 15
      %vm285 = vcmp.eq.s32.totalorder %v253, 15
      %vm286 = vcmp.eq.s32.totalorder %v254, 15
      %vm287 = vcmp.eq.s32.totalorder %v255, 15
      %vm288 = vcmp.eq.s32.totalorder %v256, 15
      %vm289 = vcmp.eq.s32.totalorder %v257, 15
      %vm290 = vcmp.eq.s32.totalorder %v258, 15
      %vm291 = vcmp.eq.s32.totalorder %v259, 15
      %vm292 = vcmp.eq.s32.totalorder %v260, 15
      %v293 = vld [vmem:[%s220] sm:$0xff]
      %v294 = vld [vmem:[%s220 + $0x8] sm:$0xff]
      %v295 = vld [vmem:[%s220 + $0x10] sm:$0xff]
      %v296 = vld [vmem:[%s220 + $0x18] sm:$0xff]
      %v297 = vld [vmem:[%s220 + $0x20] sm:$0xff]
      %v298 = vld [vmem:[%s220 + $0x28] sm:$0xff]
      %v299 = vld [vmem:[%s220 + $0x30] sm:$0xff]
      %v300 = vld [vmem:[%s220 + $0x38] sm:$0xff]
      %v301 = vld [vmem:[%s220 + $0x40] sm:$0xff]
      %v302 = vld [vmem:[%s220 + $0x48] sm:$0xff]
      %v303 = vld [vmem:[%s220 + $0x50] sm:$0xff]
      %v304 = vld [vmem:[%s220 + $0x58] sm:$0xff]
      %v305 = vld [vmem:[%s220 + $0x60] sm:$0xff]
      %v306 = vld [vmem:[%s220 + $0x68] sm:$0xff]
      %v307 = vld [vmem:[%s220 + $0x70] sm:$0xff]
      %v308 = vld [vmem:[%s220 + $0x78] sm:$0xff]
      %vm325 = vcmask 1040384
      %v326 = vrot.slane %v293, 7
      %v327 = vrot.slane %v294, 7
      %v328 = vsel %vm325, %v326, %v327
      %v329 = vrot.slane %v295, 7
      %v330 = vsel %vm325, %v327, %v329
      %v331 = vrot.slane %v296, 7
      %v332 = vsel %vm325, %v329, %v331
      %v333 = vrot.slane %v297, 7
      %v334 = vsel %vm325, %v331, %v333
      %v335 = vrot.slane %v298, 7
      %v336 = vsel %vm325, %v333, %v335
      %v337 = vrot.slane %v299, 7
      %v338 = vsel %vm325, %v335, %v337
      %v339 = vrot.slane %v300, 7
      %v340 = vsel %vm325, %v337, %v339
      %v341 = vrot.slane %v301, 7
      %v342 = vsel %vm325, %v339, %v341
      %v343 = vrot.slane %v302, 7
      %v344 = vsel %vm325, %v341, %v343
      %v345 = vrot.slane %v303, 7
      %v346 = vsel %vm325, %v343, %v345
      %v347 = vrot.slane %v304, 7
      %v348 = vsel %vm325, %v345, %v347
      %v349 = vrot.slane %v305, 7
      %v350 = vsel %vm325, %v347, %v349
      %v351 = vrot.slane %v306, 7
      %v352 = vsel %vm325, %v349, %v351
      %v353 = vrot.slane %v307, 7
      %v354 = vsel %vm325, %v351, %v353
      %v355 = vrot.slane %v308, 7
      %v356 = vsel %vm325, %v353, %v355
      %v373 = vsel %vm325, 0.0, %v326
      %vm374 = vcmask 1046528
      %v375 = vrot.slane %v293, 1
      %v376 = vrot.slane %v294, 1
      %v377 = vsel %vm374, %v375, %v376
      %v378 = vrot.slane %v295, 1
      %v379 = vsel %vm374, %v376, %v378
      %v380 = vrot.slane %v296, 1
      %v381 = vsel %vm374, %v378, %v380
      %v382 = vrot.slane %v297, 1
      %v383 = vsel %vm374, %v380, %v382
      %v384 = vrot.slane %v298, 1
      %v385 = vsel %vm374, %v382, %v384
      %v386 = vrot.slane %v299, 1
      %v387 = vsel %vm374, %v384, %v386
      %v388 = vrot.slane %v300, 1
      %v389 = vsel %vm374, %v386, %v388
      %v390 = vrot.slane %v301, 1
      %v391 = vsel %vm374, %v388, %v390
      %v392 = vrot.slane %v302, 1
      %v393 = vsel %vm374, %v390, %v392
      %v394 = vrot.slane %v303, 1
      %v395 = vsel %vm374, %v392, %v394
      %v396 = vrot.slane %v304, 1
      %v397 = vsel %vm374, %v394, %v396
      %v398 = vrot.slane %v305, 1
      %v399 = vsel %vm374, %v396, %v398
      %v400 = vrot.slane %v306, 1
      %v401 = vsel %vm374, %v398, %v400
      %v402 = vrot.slane %v307, 1
      %v403 = vsel %vm374, %v400, %v402
      %v404 = vrot.slane %v308, 1
      %v405 = vsel %vm374, %v402, %v404
      %v422 = vsel %vm374, %v404, 0.0
      %v423 = vsel %vm261, 0.0, %v373
      %v424 = vsel %vm262, 0.0, %v328
      %v425 = vsel %vm263, 0.0, %v330
      %v426 = vsel %vm264, 0.0, %v332
      %v427 = vsel %vm265, 0.0, %v334
      %v428 = vsel %vm266, 0.0, %v336
      %v429 = vsel %vm267, 0.0, %v338
      %v430 = vsel %vm268, 0.0, %v340
      %v431 = vsel %vm269, 0.0, %v342
      %v432 = vsel %vm270, 0.0, %v344
      %v433 = vsel %vm271, 0.0, %v346
      %v434 = vsel %vm272, 0.0, %v348
      %v435 = vsel %vm273, 0.0, %v350
      %v436 = vsel %vm274, 0.0, %v352
      %v437 = vsel %vm275, 0.0, %v354
      %v438 = vsel %vm276, 0.0, %v356
      %v439 = vsel %vm277, 0.0, %v377
      %v440 = vsel %vm278, 0.0, %v379
      %v441 = vsel %vm279, 0.0, %v381
      %v442 = vsel %vm280, 0.0, %v383
      %v443 = vsel %vm281, 0.0, %v385
      %v444 = vsel %vm282, 0.0, %v387
      %v445 = vsel %vm283, 0.0, %v389
      %v446 = vsel %vm284, 0.0, %v391
      %v447 = vsel %vm285, 0.0, %v393
      %v448 = vsel %vm286, 0.0, %v395
      %v449 = vsel %vm287, 0.0, %v397
      %v450 = vsel %vm288, 0.0, %v399
      %v451 = vsel %vm289, 0.0, %v401
      %v452 = vsel %vm290, 0.0, %v403
      %v453 = vsel %vm291, 0.0, %v405
      %v454 = vsel %vm292, 0.0, %v422
      %v455 = vpack.c.bf16 %v424, %v423
      %v456 = vpack.c.bf16 %v294, %v293
      %v457 = vpack.c.bf16 %v440, %v439
      %v458 = vpack.c.bf16 %v426, %v425
      %v459 = vpack.c.bf16 %v296, %v295
      %v460 = vpack.c.bf16 %v442, %v441
      %v461 = vpack.c.bf16 %v428, %v427
      %v462 = vpack.c.bf16 %v298, %v297
      %v463 = vpack.c.bf16 %v444, %v443
      %v464 = vpack.c.bf16 %v430, %v429
      %v465 = vpack.c.bf16 %v300, %v299
      %v466 = vpack.c.bf16 %v446, %v445
      %v467 = vpack.c.bf16 %v432, %v431
      %v468 = vpack.c.bf16 %v302, %v301
      %v469 = vpack.c.bf16 %v448, %v447
      %v470 = vpack.c.bf16 %v434, %v433
      %v471 = vpack.c.bf16 %v304, %v303
      %v472 = vpack.c.bf16 %v450, %v449
      %v473 = vpack.c.bf16 %v436, %v435
      %v474 = vpack.c.bf16 %v306, %v305
      %v475 = vpack.c.bf16 %v452, %v451
      %v476 = vpack.c.bf16 %v438, %v437
      %v477 = vpack.c.bf16 %v308, %v307
      %v478 = vpack.c.bf16 %v454, %v453
      %v479 = vld [vmem:[%s1] sm:$0xf]
      %v480 = vld [vmem:[%s1 + $0x4] sm:$0xf]
      %v481 = vld [vmem:[%s1 + $0x8] sm:$0xf]
      %v482 = vld [vmem:[%s1 + $0xc] sm:$0xf]
      %v483 = vld [vmem:[%s1 + $0x10] sm:$0xf]
      %v484 = vld [vmem:[%s1 + $0x14] sm:$0xf]
      %v485 = vld [vmem:[%s1 + $0x18] sm:$0xf]
      %v486 = vld [vmem:[%s1 + $0x1c] sm:$0xf]
      %v487 = vld [vmem:[%s1 + $0x20] sm:$0xf]
      %v488 = vld [vmem:[%s1 + $0x24] sm:$0xf]
      %v489 = vld [vmem:[%s1 + $0x28] sm:$0xf]
      %v490 = vld [vmem:[%s1 + $0x2c] sm:$0xf]
      %v491 = vld [vmem:[%s1 + $0x30] sm:$0xf]
      %v492 = vld [vmem:[%s1 + $0x34] sm:$0xf]
      %v493 = vld [vmem:[%s1 + $0x38] sm:$0xf]
      %v494 = vld [vmem:[%s1 + $0x3c] sm:$0xf]
      %v495 = vld [vmem:[%s1 + $0x40] sm:$0xf]
      %v496 = vld [vmem:[%s1 + $0x44] sm:$0xf]
      %v497 = vld [vmem:[%s1 + $0x48] sm:$0xf]
      %v498 = vld [vmem:[%s1 + $0x4c] sm:$0xf]
      %v499 = vld [vmem:[%s1 + $0x50] sm:$0xf]
      %v500 = vld [vmem:[%s1 + $0x54] sm:$0xf]
      %v501 = vld [vmem:[%s1 + $0x58] sm:$0xf]
      %v502 = vld [vmem:[%s1 + $0x5c] sm:$0xf]
      %v503 = vld [vmem:[%s1 + $0x60] sm:$0xf]
      %v504 = vld [vmem:[%s1 + $0x64] sm:$0xf]
      %v505 = vld [vmem:[%s1 + $0x68] sm:$0xf]
      %v506 = vld [vmem:[%s1 + $0x6c] sm:$0xf]
      %v507 = vld [vmem:[%s1 + $0x70] sm:$0xf]
      %v508 = vld [vmem:[%s1 + $0x74] sm:$0xf]
      %v509 = vld [vmem:[%s1 + $0x78] sm:$0xf]
      %v510 = vld [vmem:[%s1 + $0x7c] sm:$0xf]
      %v511 = vld [vmem:[%s1 + $0x80] sm:$0xf]
      %v512 = vld [vmem:[%s1 + $0x84] sm:$0xf]
      %v513 = vld [vmem:[%s1 + $0x88] sm:$0xf]
      %v514 = vld [vmem:[%s1 + $0x8c] sm:$0xf]
      %v515 = vld [vmem:[%s1 + $0x90] sm:$0xf]
      %v516 = vld [vmem:[%s1 + $0x94] sm:$0xf]
      %v517 = vld [vmem:[%s1 + $0x98] sm:$0xf]
      %v518 = vld [vmem:[%s1 + $0x9c] sm:$0xf]
      %v519 = vld [vmem:[%s1 + $0xa0] sm:$0xf]
      %v520 = vld [vmem:[%s1 + $0xa4] sm:$0xf]
      %v521 = vld [vmem:[%s1 + $0xa8] sm:$0xf]
      %v522 = vld [vmem:[%s1 + $0xac] sm:$0xf]
      %v523 = vld [vmem:[%s1 + $0xb0] sm:$0xf]
      %v524 = vld [vmem:[%s1 + $0xb4] sm:$0xf]
      %v525 = vld [vmem:[%s1 + $0xb8] sm:$0xf]
      %v526 = vld [vmem:[%s1 + $0xbc] sm:$0xf]
      %v527 = vld [vmem:[%s2] sm:$0x1]
      %v529 = vperm.slane %v527, 0
      %v579 = vunpack.c.l.b16 %v479
      %v580 = vunpack.c.l.b16 %v480
      %v581 = vunpack.c.l.b16 %v481
      %v582 = vunpack.c.l.b16 %v482
      %v583 = vunpack.c.l.b16 %v483
      %v584 = vunpack.c.l.b16 %v484
      %v585 = vunpack.c.l.b16 %v485
      %v586 = vunpack.c.l.b16 %v486
      %v587 = vunpack.c.l.b16 %v487
      %v588 = vunpack.c.l.b16 %v488
      %v589 = vunpack.c.l.b16 %v489
      %v590 = vunpack.c.l.b16 %v490
      %v591 = vunpack.c.l.b16 %v491
      %v592 = vunpack.c.l.b16 %v492
      %v593 = vunpack.c.l.b16 %v493
      %v594 = vunpack.c.l.b16 %v494
      %v595 = vunpack.c.l.b16 %v495
      %v596 = vunpack.c.l.b16 %v496
      %v597 = vunpack.c.l.b16 %v497
      %v598 = vunpack.c.l.b16 %v498
      %v599 = vunpack.c.l.b16 %v499
      %v600 = vunpack.c.l.b16 %v500
      %v601 = vunpack.c.l.b16 %v501
      %v602 = vunpack.c.l.b16 %v502
      %v603 = vunpack.c.l.b16 %v503
      %v604 = vunpack.c.l.b16 %v504
      %v605 = vunpack.c.l.b16 %v505
      %v606 = vunpack.c.l.b16 %v506
      %v607 = vunpack.c.l.b16 %v507
      %v608 = vunpack.c.l.b16 %v508
      %v609 = vunpack.c.l.b16 %v509
      %v610 = vunpack.c.l.b16 %v510
      %v611 = vunpack.c.l.b16 %v511
      %v612 = vunpack.c.l.b16 %v512
      %v613 = vunpack.c.l.b16 %v513
      %v614 = vunpack.c.l.b16 %v514
      %v615 = vunpack.c.l.b16 %v515
      %v616 = vunpack.c.l.b16 %v516
      %v617 = vunpack.c.l.b16 %v517
      %v618 = vunpack.c.l.b16 %v518
      %v619 = vunpack.c.l.b16 %v519
      %v620 = vunpack.c.l.b16 %v520
      %v621 = vunpack.c.l.b16 %v521
      %v622 = vunpack.c.l.b16 %v522
      %v623 = vunpack.c.l.b16 %v523
      %v624 = vunpack.c.l.b16 %v524
      %v625 = vunpack.c.l.b16 %v525
      %v626 = vunpack.c.l.b16 %v526
      %v627 = vpack.c.b16 %v580, %v579
      %v628 = vpack.c.b16 %v582, %v581
      %v629 = vpack.c.b16 %v584, %v583
      %v630 = vpack.c.b16 %v586, %v585
      %v631 = vpack.c.b16 %v588, %v587
      %v632 = vpack.c.b16 %v590, %v589
      %v633 = vpack.c.b16 %v592, %v591
      %v634 = vpack.c.b16 %v594, %v593
      %v635 = vpack.c.b16 %v596, %v595
      %v636 = vpack.c.b16 %v598, %v597
      %v637 = vpack.c.b16 %v600, %v599
      %v638 = vpack.c.b16 %v602, %v601
      %v639 = vpack.c.b16 %v604, %v603
      %v640 = vpack.c.b16 %v606, %v605
      %v641 = vpack.c.b16 %v608, %v607
      %v642 = vpack.c.b16 %v610, %v609
      %v643 = vpack.c.b16 %v612, %v611
      %v644 = vpack.c.b16 %v614, %v613
      %v645 = vpack.c.b16 %v616, %v615
      %v646 = vpack.c.b16 %v618, %v617
      %v647 = vpack.c.b16 %v620, %v619
      %v648 = vpack.c.b16 %v622, %v621
      %v649 = vpack.c.b16 %v624, %v623
      %v650 = vpack.c.b16 %v626, %v625
      %675 = vmatpush.bf16.msra.mxu0 %v634
      %676 = vmatpush.bf16.msra.mxu0 %v633
      %677 = vmatpush.bf16.msra.mxu0 %v632
      %678 = vmatpush.bf16.msra.mxu0 %v631
      %679 = vmatpush.bf16.msra.mxu0 %v630
      %680 = vmatpush.bf16.msra.mxu0 %v629
      %681 = vmatpush.bf16.msra.mxu0 %v628
      %682 = vmatpush.bf16.msra.mxu0 %v627
      %683 = vmatmul.bf16.gmra.mxu0 %v455
      %v684 = vpop.f32.mrf.mxu0
      %v685 = vadd.f32 %v529, %v684
      %v686 = vpop.f32.mrf.mxu0
      %v687 = vadd.f32 %v529, %v686
      %688 = vmatmul.bf16.gmra.mxu0 %v458
      %v689 = vpop.f32.mrf.mxu0
      %v690 = vadd.f32 %v529, %v689
      %v691 = vpop.f32.mrf.mxu0
      %v692 = vadd.f32 %v529, %v691
      %693 = vmatmul.bf16.gmra.mxu0 %v461
      %v694 = vpop.f32.mrf.mxu0
      %v695 = vadd.f32 %v529, %v694
      %v696 = vpop.f32.mrf.mxu0
      %v697 = vadd.f32 %v529, %v696
      %698 = vmatmul.bf16.gmra.mxu0 %v464
      %v699 = vpop.f32.mrf.mxu0
      %v700 = vadd.f32 %v529, %v699
      %v701 = vpop.f32.mrf.mxu0
      %v702 = vadd.f32 %v529, %v701
      %703 = vmatmul.bf16.gmra.mxu0 %v467
      %v704 = vpop.f32.mrf.mxu0
      %v705 = vadd.f32 %v529, %v704
      %v706 = vpop.f32.mrf.mxu0
      %v707 = vadd.f32 %v529, %v706
      %708 = vmatmul.bf16.gmra.mxu0 %v470
      %v709 = vpop.f32.mrf.mxu0
      %v710 = vadd.f32 %v529, %v709
      %v711 = vpop.f32.mrf.mxu0
      %v712 = vadd.f32 %v529, %v711
      %713 = vmatmul.bf16.gmra.mxu0 %v473
      %v714 = vpop.f32.mrf.mxu0
      %v715 = vadd.f32 %v529, %v714
      %v716 = vpop.f32.mrf.mxu0
      %v717 = vadd.f32 %v529, %v716
      %718 = vmatmul.bf16.gmra.mxu0 %v476
      %v719 = vpop.f32.mrf.mxu0
      %v720 = vadd.f32 %v529, %v719
      %v721 = vpop.f32.mrf.mxu0
      %v722 = vadd.f32 %v529, %v721
      %723 = vdwg.mxu0
      %724 = vmatpush.bf16.msra.mxu0 %v642
      %725 = vmatpush.bf16.msra.mxu0 %v641
      %726 = vmatpush.bf16.msra.mxu0 %v640
      %727 = vmatpush.bf16.msra.mxu0 %v639
      %728 = vmatpush.bf16.msra.mxu0 %v638
      %729 = vmatpush.bf16.msra.mxu0 %v637
      %730 = vmatpush.bf16.msra.mxu0 %v636
      %731 = vmatpush.bf16.msra.mxu0 %v635
      %732 = vmatmul.bf16.gmra.mxu0 %v456
      %v733 = vpop.f32.mrf.mxu0
      %v734 = vadd.f32 %v685, %v733
      %v735 = vpop.f32.mrf.mxu0
      %v736 = vadd.f32 %v687, %v735
      %737 = vmatmul.bf16.gmra.mxu0 %v459
      %v738 = vpop.f32.mrf.mxu0
      %v739 = vadd.f32 %v690, %v738
      %v740 = vpop.f32.mrf.mxu0
      %v741 = vadd.f32 %v692, %v740
      %742 = vmatmul.bf16.gmra.mxu0 %v462
      %v743 = vpop.f32.mrf.mxu0
      %v744 = vadd.f32 %v695, %v743
      %v745 = vpop.f32.mrf.mxu0
      %v746 = vadd.f32 %v697, %v745
      %747 = vmatmul.bf16.gmra.mxu0 %v465
      %v748 = vpop.f32.mrf.mxu0
      %v749 = vadd.f32 %v700, %v748
      %v750 = vpop.f32.mrf.mxu0
      %v751 = vadd.f32 %v702, %v750
      %752 = vmatmul.bf16.gmra.mxu0 %v468
      %v753 = vpop.f32.mrf.mxu0
      %v754 = vadd.f32 %v705, %v753
      %v755 = vpop.f32.mrf.mxu0
      %v756 = vadd.f32 %v707, %v755
      %757 = vmatmul.bf16.gmra.mxu0 %v471
      %v758 = vpop.f32.mrf.mxu0
      %v759 = vadd.f32 %v710, %v758
      %v760 = vpop.f32.mrf.mxu0
      %v761 = vadd.f32 %v712, %v760
      %762 = vmatmul.bf16.gmra.mxu0 %v474
      %v763 = vpop.f32.mrf.mxu0
      %v764 = vadd.f32 %v715, %v763
      %v765 = vpop.f32.mrf.mxu0
      %v766 = vadd.f32 %v717, %v765
      %767 = vmatmul.bf16.gmra.mxu0 %v477
      %v768 = vpop.f32.mrf.mxu0
      %v769 = vadd.f32 %v720, %v768
      %v770 = vpop.f32.mrf.mxu0
      %v771 = vadd.f32 %v722, %v770
      %772 = vdwg.mxu0
      %773 = vmatpush.bf16.msra.mxu0 %v650
      %774 = vmatpush.bf16.msra.mxu0 %v649
      %775 = vmatpush.bf16.msra.mxu0 %v648
      %776 = vmatpush.bf16.msra.mxu0 %v647
      %777 = vmatpush.bf16.msra.mxu0 %v646
      %778 = vmatpush.bf16.msra.mxu0 %v645
      %779 = vmatpush.bf16.msra.mxu0 %v644
      %780 = vmatpush.bf16.msra.mxu0 %v643
      %781 = vmatmul.bf16.gmra.mxu0 %v457
      %v782 = vpop.f32.mrf.mxu0
      %v783 = vadd.f32 %v734, %v782
      %v784 = vpop.f32.mrf.mxu0
      %v785 = vadd.f32 %v736, %v784
      %786 = vmatmul.bf16.gmra.mxu0 %v460
      %v787 = vpop.f32.mrf.mxu0
      %v788 = vadd.f32 %v739, %v787
      %v789 = vpop.f32.mrf.mxu0
      %v790 = vadd.f32 %v741, %v789
      %791 = vmatmul.bf16.gmra.mxu0 %v463
      %v792 = vpop.f32.mrf.mxu0
      %v793 = vadd.f32 %v744, %v792
      %v794 = vpop.f32.mrf.mxu0
      %v795 = vadd.f32 %v746, %v794
      %796 = vmatmul.bf16.gmra.mxu0 %v466
      %v797 = vpop.f32.mrf.mxu0
      %v798 = vadd.f32 %v749, %v797
      %v799 = vpop.f32.mrf.mxu0
      %v800 = vadd.f32 %v751, %v799
      %801 = vmatmul.bf16.gmra.mxu0 %v469
      %v802 = vpop.f32.mrf.mxu0
      %v803 = vadd.f32 %v754, %v802
      %v804 = vpop.f32.mrf.mxu0
      %v805 = vadd.f32 %v756, %v804
      %806 = vmatmul.bf16.gmra.mxu0 %v472
      %v807 = vpop.f32.mrf.mxu0
      %v808 = vadd.f32 %v759, %v807
      %v809 = vpop.f32.mrf.mxu0
      %v810 = vadd.f32 %v761, %v809
      %811 = vmatmul.bf16.gmra.mxu0 %v475
      %v812 = vpop.f32.mrf.mxu0
      %v813 = vadd.f32 %v764, %v812
      %v814 = vpop.f32.mrf.mxu0
      %v815 = vadd.f32 %v766, %v814
      %816 = vmatmul.bf16.gmra.mxu0 %v478
      %v817 = vpop.f32.mrf.mxu0
      %v818 = vadd.f32 %v769, %v817
      %v819 = vpop.f32.mrf.mxu0
      %v820 = vadd.f32 %v771, %v819
      %821 = vdwg.mxu0
      %v822 = vmax.f32 %v783, 0.0
      %v823 = vmax.f32 %v785, 0.0
      %v824 = vmax.f32 %v788, 0.0
      %v825 = vmax.f32 %v790, 0.0
      %v826 = vmax.f32 %v793, 0.0
      %v827 = vmax.f32 %v795, 0.0
      %v828 = vmax.f32 %v798, 0.0
      %v829 = vmax.f32 %v800, 0.0
      %v830 = vmax.f32 %v803, 0.0
      %v831 = vmax.f32 %v805, 0.0
      %v832 = vmax.f32 %v808, 0.0
      %v833 = vmax.f32 %v810, 0.0
      %v834 = vmax.f32 %v813, 0.0
      %v835 = vmax.f32 %v815, 0.0
      %v836 = vmax.f32 %v818, 0.0
      %v837 = vmax.f32 %v820, 0.0
      %v854 = vrot.slane %v822, 7
      %v855 = vrot.slane %v823, 7
      %v856 = vsel %vm325, %v854, %v855
      %v857 = vrot.slane %v824, 7
      %v858 = vsel %vm325, %v855, %v857
      %v859 = vrot.slane %v825, 7
      %v860 = vsel %vm325, %v857, %v859
      %v861 = vrot.slane %v826, 7
      %v862 = vsel %vm325, %v859, %v861
      %v863 = vrot.slane %v827, 7
      %v864 = vsel %vm325, %v861, %v863
      %v865 = vrot.slane %v828, 7
      %v866 = vsel %vm325, %v863, %v865
      %v867 = vrot.slane %v829, 7
      %v868 = vsel %vm325, %v865, %v867
      %v869 = vrot.slane %v830, 7
      %v870 = vsel %vm325, %v867, %v869
      %v871 = vrot.slane %v831, 7
      %v872 = vsel %vm325, %v869, %v871
      %v873 = vrot.slane %v832, 7
      %v874 = vsel %vm325, %v871, %v873
      %v875 = vrot.slane %v833, 7
      %v876 = vsel %vm325, %v873, %v875
      %v877 = vrot.slane %v834, 7
      %v878 = vsel %vm325, %v875, %v877
      %v879 = vrot.slane %v835, 7
      %v880 = vsel %vm325, %v877, %v879
      %v881 = vrot.slane %v836, 7
      %v882 = vsel %vm325, %v879, %v881
      %v883 = vrot.slane %v837, 7
      %v884 = vsel %vm325, %v881, %v883
      %v901 = vsel %vm325, 0.0, %v854
      %v902 = vrot.slane %v822, 1
      %v903 = vrot.slane %v823, 1
      %v904 = vsel %vm374, %v902, %v903
      %v905 = vrot.slane %v824, 1
      %v906 = vsel %vm374, %v903, %v905
      %v907 = vrot.slane %v825, 1
      %v908 = vsel %vm374, %v905, %v907
      %v909 = vrot.slane %v826, 1
      %v910 = vsel %vm374, %v907, %v909
      %v911 = vrot.slane %v827, 1
      %v912 = vsel %vm374, %v909, %v911
      %v913 = vrot.slane %v828, 1
      %v914 = vsel %vm374, %v911, %v913
      %v915 = vrot.slane %v829, 1
      %v916 = vsel %vm374, %v913, %v915
      %v917 = vrot.slane %v830, 1
      %v918 = vsel %vm374, %v915, %v917
      %v919 = vrot.slane %v831, 1
      %v920 = vsel %vm374, %v917, %v919
      %v921 = vrot.slane %v832, 1
      %v922 = vsel %vm374, %v919, %v921
      %v923 = vrot.slane %v833, 1
      %v924 = vsel %vm374, %v921, %v923
      %v925 = vrot.slane %v834, 1
      %v926 = vsel %vm374, %v923, %v925
      %v927 = vrot.slane %v835, 1
      %v928 = vsel %vm374, %v925, %v927
      %v929 = vrot.slane %v836, 1
      %v930 = vsel %vm374, %v927, %v929
      %v931 = vrot.slane %v837, 1
      %v932 = vsel %vm374, %v929, %v931
      %v949 = vsel %vm374, %v931, 0.0
      %v950 = vsel %vm261, 0.0, %v901
      %v951 = vsel %vm262, 0.0, %v856
      %v952 = vsel %vm263, 0.0, %v858
      %v953 = vsel %vm264, 0.0, %v860
      %v954 = vsel %vm265, 0.0, %v862
      %v955 = vsel %vm266, 0.0, %v864
      %v956 = vsel %vm267, 0.0, %v866
      %v957 = vsel %vm268, 0.0, %v868
      %v958 = vsel %vm269, 0.0, %v870
      %v959 = vsel %vm270, 0.0, %v872
      %v960 = vsel %vm271, 0.0, %v874
      %v961 = vsel %vm272, 0.0, %v876
      %v962 = vsel %vm273, 0.0, %v878
      %v963 = vsel %vm274, 0.0, %v880
      %v964 = vsel %vm275, 0.0, %v882
      %v965 = vsel %vm276, 0.0, %v884
      %v966 = vsel %vm277, 0.0, %v904
      %v967 = vsel %vm278, 0.0, %v906
      %v968 = vsel %vm279, 0.0, %v908
      %v969 = vsel %vm280, 0.0, %v910
      %v970 = vsel %vm281, 0.0, %v912
      %v971 = vsel %vm282, 0.0, %v914
      %v972 = vsel %vm283, 0.0, %v916
      %v973 = vsel %vm284, 0.0, %v918
      %v974 = vsel %vm285, 0.0, %v920
      %v975 = vsel %vm286, 0.0, %v922
      %v976 = vsel %vm287, 0.0, %v924
      %v977 = vsel %vm288, 0.0, %v926
      %v978 = vsel %vm289, 0.0, %v928
      %v979 = vsel %vm290, 0.0, %v930
      %v980 = vsel %vm291, 0.0, %v932
      %v981 = vsel %vm292, 0.0, %v949
      %v982 = vpack.c.bf16 %v951, %v950
      %v983 = vpack.c.bf16 %v823, %v822
      %v984 = vpack.c.bf16 %v967, %v966
      %v985 = vpack.c.bf16 %v953, %v952
      %v986 = vpack.c.bf16 %v825, %v824
      %v987 = vpack.c.bf16 %v969, %v968
      %v988 = vpack.c.bf16 %v955, %v954
      %v989 = vpack.c.bf16 %v827, %v826
      %v990 = vpack.c.bf16 %v971, %v970
      %v991 = vpack.c.bf16 %v957, %v956
      %v992 = vpack.c.bf16 %v829, %v828
      %v993 = vpack.c.bf16 %v973, %v972
      %v994 = vpack.c.bf16 %v959, %v958
      %v995 = vpack.c.bf16 %v831, %v830
      %v996 = vpack.c.bf16 %v975, %v974
      %v997 = vpack.c.bf16 %v961, %v960
      %v998 = vpack.c.bf16 %v833, %v832
      %v999 = vpack.c.bf16 %v977, %v976
      %v1000 = vpack.c.bf16 %v963, %v962
      %v1001 = vpack.c.bf16 %v835, %v834
      %v1002 = vpack.c.bf16 %v979, %v978
      %v1003 = vpack.c.bf16 %v965, %v964
      %v1004 = vpack.c.bf16 %v837, %v836
      %v1005 = vpack.c.bf16 %v981, %v980
      %v1006 = vld [vmem:[%s3] sm:$0xf]
      %v1007 = vld [vmem:[%s3 + $0x4] sm:$0xf]
      %v1008 = vld [vmem:[%s3 + $0x8] sm:$0xf]
      %v1009 = vld [vmem:[%s3 + $0xc] sm:$0xf]
      %v1010 = vld [vmem:[%s3 + $0x10] sm:$0xf]
      %v1011 = vld [vmem:[%s3 + $0x14] sm:$0xf]
      %v1012 = vld [vmem:[%s3 + $0x18] sm:$0xf]
      %v1013 = vld [vmem:[%s3 + $0x1c] sm:$0xf]
      %v1014 = vld [vmem:[%s3 + $0x20] sm:$0xf]
      %v1015 = vld [vmem:[%s3 + $0x24] sm:$0xf]
      %v1016 = vld [vmem:[%s3 + $0x28] sm:$0xf]
      %v1017 = vld [vmem:[%s3 + $0x2c] sm:$0xf]
      %v1018 = vld [vmem:[%s3 + $0x30] sm:$0xf]
      %v1019 = vld [vmem:[%s3 + $0x34] sm:$0xf]
      %v1020 = vld [vmem:[%s3 + $0x38] sm:$0xf]
      %v1021 = vld [vmem:[%s3 + $0x3c] sm:$0xf]
      %v1022 = vld [vmem:[%s3 + $0x40] sm:$0xf]
      %v1023 = vld [vmem:[%s3 + $0x44] sm:$0xf]
      %v1024 = vld [vmem:[%s3 + $0x48] sm:$0xf]
      %v1025 = vld [vmem:[%s3 + $0x4c] sm:$0xf]
      %v1026 = vld [vmem:[%s3 + $0x50] sm:$0xf]
      %v1027 = vld [vmem:[%s3 + $0x54] sm:$0xf]
      %v1028 = vld [vmem:[%s3 + $0x58] sm:$0xf]
      %v1029 = vld [vmem:[%s3 + $0x5c] sm:$0xf]
      %v1030 = vld [vmem:[%s3 + $0x60] sm:$0xf]
      %v1031 = vld [vmem:[%s3 + $0x64] sm:$0xf]
      %v1032 = vld [vmem:[%s3 + $0x68] sm:$0xf]
      %v1033 = vld [vmem:[%s3 + $0x6c] sm:$0xf]
      %v1034 = vld [vmem:[%s3 + $0x70] sm:$0xf]
      %v1035 = vld [vmem:[%s3 + $0x74] sm:$0xf]
      %v1036 = vld [vmem:[%s3 + $0x78] sm:$0xf]
      %v1037 = vld [vmem:[%s3 + $0x7c] sm:$0xf]
      %v1038 = vld [vmem:[%s3 + $0x80] sm:$0xf]
      %v1039 = vld [vmem:[%s3 + $0x84] sm:$0xf]
      %v1040 = vld [vmem:[%s3 + $0x88] sm:$0xf]
      %v1041 = vld [vmem:[%s3 + $0x8c] sm:$0xf]
      %v1042 = vld [vmem:[%s3 + $0x90] sm:$0xf]
      %v1043 = vld [vmem:[%s3 + $0x94] sm:$0xf]
      %v1044 = vld [vmem:[%s3 + $0x98] sm:$0xf]
      %v1045 = vld [vmem:[%s3 + $0x9c] sm:$0xf]
      %v1046 = vld [vmem:[%s3 + $0xa0] sm:$0xf]
      %v1047 = vld [vmem:[%s3 + $0xa4] sm:$0xf]
      %v1048 = vld [vmem:[%s3 + $0xa8] sm:$0xf]
      %v1049 = vld [vmem:[%s3 + $0xac] sm:$0xf]
      %v1050 = vld [vmem:[%s3 + $0xb0] sm:$0xf]
      %v1051 = vld [vmem:[%s3 + $0xb4] sm:$0xf]
      %v1052 = vld [vmem:[%s3 + $0xb8] sm:$0xf]
      %v1053 = vld [vmem:[%s3 + $0xbc] sm:$0xf]
      %v1054 = vld [vmem:[%s4] sm:$0x1]
      %v1056 = vperm.slane %v1054, 0
      %v1106 = vunpack.c.l.b16 %v1006
      %v1107 = vunpack.c.l.b16 %v1007
      %v1108 = vunpack.c.l.b16 %v1008
      %v1109 = vunpack.c.l.b16 %v1009
      %v1110 = vunpack.c.l.b16 %v1010
      %v1111 = vunpack.c.l.b16 %v1011
      %v1112 = vunpack.c.l.b16 %v1012
      %v1113 = vunpack.c.l.b16 %v1013
      %v1114 = vunpack.c.l.b16 %v1014
      %v1115 = vunpack.c.l.b16 %v1015
      %v1116 = vunpack.c.l.b16 %v1016
      %v1117 = vunpack.c.l.b16 %v1017
      %v1118 = vunpack.c.l.b16 %v1018
      %v1119 = vunpack.c.l.b16 %v1019
      %v1120 = vunpack.c.l.b16 %v1020
      %v1121 = vunpack.c.l.b16 %v1021
      %v1122 = vunpack.c.l.b16 %v1022
      %v1123 = vunpack.c.l.b16 %v1023
      %v1124 = vunpack.c.l.b16 %v1024
      %v1125 = vunpack.c.l.b16 %v1025
      %v1126 = vunpack.c.l.b16 %v1026
      %v1127 = vunpack.c.l.b16 %v1027
      %v1128 = vunpack.c.l.b16 %v1028
      %v1129 = vunpack.c.l.b16 %v1029
      %v1130 = vunpack.c.l.b16 %v1030
      %v1131 = vunpack.c.l.b16 %v1031
      %v1132 = vunpack.c.l.b16 %v1032
      %v1133 = vunpack.c.l.b16 %v1033
      %v1134 = vunpack.c.l.b16 %v1034
      %v1135 = vunpack.c.l.b16 %v1035
      %v1136 = vunpack.c.l.b16 %v1036
      %v1137 = vunpack.c.l.b16 %v1037
      %v1138 = vunpack.c.l.b16 %v1038
      %v1139 = vunpack.c.l.b16 %v1039
      %v1140 = vunpack.c.l.b16 %v1040
      %v1141 = vunpack.c.l.b16 %v1041
      %v1142 = vunpack.c.l.b16 %v1042
      %v1143 = vunpack.c.l.b16 %v1043
      %v1144 = vunpack.c.l.b16 %v1044
      %v1145 = vunpack.c.l.b16 %v1045
      %v1146 = vunpack.c.l.b16 %v1046
      %v1147 = vunpack.c.l.b16 %v1047
      %v1148 = vunpack.c.l.b16 %v1048
      %v1149 = vunpack.c.l.b16 %v1049
      %v1150 = vunpack.c.l.b16 %v1050
      %v1151 = vunpack.c.l.b16 %v1051
      %v1152 = vunpack.c.l.b16 %v1052
      %v1153 = vunpack.c.l.b16 %v1053
      %v1154 = vpack.c.b16 %v1107, %v1106
      %v1155 = vpack.c.b16 %v1109, %v1108
      %v1156 = vpack.c.b16 %v1111, %v1110
      %v1157 = vpack.c.b16 %v1113, %v1112
      %v1158 = vpack.c.b16 %v1115, %v1114
      %v1159 = vpack.c.b16 %v1117, %v1116
      %v1160 = vpack.c.b16 %v1119, %v1118
      %v1161 = vpack.c.b16 %v1121, %v1120
      %v1162 = vpack.c.b16 %v1123, %v1122
      %v1163 = vpack.c.b16 %v1125, %v1124
      %v1164 = vpack.c.b16 %v1127, %v1126
      %v1165 = vpack.c.b16 %v1129, %v1128
      %v1166 = vpack.c.b16 %v1131, %v1130
      %v1167 = vpack.c.b16 %v1133, %v1132
      %v1168 = vpack.c.b16 %v1135, %v1134
      %v1169 = vpack.c.b16 %v1137, %v1136
      %v1170 = vpack.c.b16 %v1139, %v1138
      %v1171 = vpack.c.b16 %v1141, %v1140
      %v1172 = vpack.c.b16 %v1143, %v1142
      %v1173 = vpack.c.b16 %v1145, %v1144
      %v1174 = vpack.c.b16 %v1147, %v1146
      %v1175 = vpack.c.b16 %v1149, %v1148
      %v1176 = vpack.c.b16 %v1151, %v1150
      %v1177 = vpack.c.b16 %v1153, %v1152
      %1202 = vmatpush.bf16.msra.mxu0 %v1161
      %1203 = vmatpush.bf16.msra.mxu0 %v1160
      %1204 = vmatpush.bf16.msra.mxu0 %v1159
      %1205 = vmatpush.bf16.msra.mxu0 %v1158
      %1206 = vmatpush.bf16.msra.mxu0 %v1157
      %1207 = vmatpush.bf16.msra.mxu0 %v1156
      %1208 = vmatpush.bf16.msra.mxu0 %v1155
      %1209 = vmatpush.bf16.msra.mxu0 %v1154
      %1210 = vmatmul.bf16.gmra.mxu0 %v982
      %v1211 = vpop.f32.mrf.mxu0
      %v1212 = vadd.f32 %v1056, %v1211
      %v1213 = vpop.f32.mrf.mxu0
      %v1214 = vadd.f32 %v1056, %v1213
      %1215 = vmatmul.bf16.gmra.mxu0 %v985
      %v1216 = vpop.f32.mrf.mxu0
      %v1217 = vadd.f32 %v1056, %v1216
      %v1218 = vpop.f32.mrf.mxu0
      %v1219 = vadd.f32 %v1056, %v1218
      %1220 = vmatmul.bf16.gmra.mxu0 %v988
      %v1221 = vpop.f32.mrf.mxu0
      %v1222 = vadd.f32 %v1056, %v1221
      %v1223 = vpop.f32.mrf.mxu0
      %v1224 = vadd.f32 %v1056, %v1223
      %1225 = vmatmul.bf16.gmra.mxu0 %v991
      %v1226 = vpop.f32.mrf.mxu0
      %v1227 = vadd.f32 %v1056, %v1226
      %v1228 = vpop.f32.mrf.mxu0
      %v1229 = vadd.f32 %v1056, %v1228
      %1230 = vmatmul.bf16.gmra.mxu0 %v994
      %v1231 = vpop.f32.mrf.mxu0
      %v1232 = vadd.f32 %v1056, %v1231
      %v1233 = vpop.f32.mrf.mxu0
      %v1234 = vadd.f32 %v1056, %v1233
      %1235 = vmatmul.bf16.gmra.mxu0 %v997
      %v1236 = vpop.f32.mrf.mxu0
      %v1237 = vadd.f32 %v1056, %v1236
      %v1238 = vpop.f32.mrf.mxu0
      %v1239 = vadd.f32 %v1056, %v1238
      %1240 = vmatmul.bf16.gmra.mxu0 %v1000
      %v1241 = vpop.f32.mrf.mxu0
      %v1242 = vadd.f32 %v1056, %v1241
      %v1243 = vpop.f32.mrf.mxu0
      %v1244 = vadd.f32 %v1056, %v1243
      %1245 = vmatmul.bf16.gmra.mxu0 %v1003
      %v1246 = vpop.f32.mrf.mxu0
      %v1247 = vadd.f32 %v1056, %v1246
      %v1248 = vpop.f32.mrf.mxu0
      %v1249 = vadd.f32 %v1056, %v1248
      %1250 = vdwg.mxu0
      %1251 = vmatpush.bf16.msra.mxu0 %v1169
      %1252 = vmatpush.bf16.msra.mxu0 %v1168
      %1253 = vmatpush.bf16.msra.mxu0 %v1167
      %1254 = vmatpush.bf16.msra.mxu0 %v1166
      %1255 = vmatpush.bf16.msra.mxu0 %v1165
      %1256 = vmatpush.bf16.msra.mxu0 %v1164
      %1257 = vmatpush.bf16.msra.mxu0 %v1163
      %1258 = vmatpush.bf16.msra.mxu0 %v1162
      %1259 = vmatmul.bf16.gmra.mxu0 %v983
      %v1260 = vpop.f32.mrf.mxu0
      %v1261 = vadd.f32 %v1212, %v1260
      %v1262 = vpop.f32.mrf.mxu0
      %v1263 = vadd.f32 %v1214, %v1262
      %1264 = vmatmul.bf16.gmra.mxu0 %v986
      %v1265 = vpop.f32.mrf.mxu0
      %v1266 = vadd.f32 %v1217, %v1265
      %v1267 = vpop.f32.mrf.mxu0
      %v1268 = vadd.f32 %v1219, %v1267
      %1269 = vmatmul.bf16.gmra.mxu0 %v989
      %v1270 = vpop.f32.mrf.mxu0
      %v1271 = vadd.f32 %v1222, %v1270
      %v1272 = vpop.f32.mrf.mxu0
      %v1273 = vadd.f32 %v1224, %v1272
      %1274 = vmatmul.bf16.gmra.mxu0 %v992
      %v1275 = vpop.f32.mrf.mxu0
      %v1276 = vadd.f32 %v1227, %v1275
      %v1277 = vpop.f32.mrf.mxu0
      %v1278 = vadd.f32 %v1229, %v1277
      %1279 = vmatmul.bf16.gmra.mxu0 %v995
      %v1280 = vpop.f32.mrf.mxu0
      %v1281 = vadd.f32 %v1232, %v1280
      %v1282 = vpop.f32.mrf.mxu0
      %v1283 = vadd.f32 %v1234, %v1282
      %1284 = vmatmul.bf16.gmra.mxu0 %v998
      %v1285 = vpop.f32.mrf.mxu0
      %v1286 = vadd.f32 %v1237, %v1285
      %v1287 = vpop.f32.mrf.mxu0
      %v1288 = vadd.f32 %v1239, %v1287
      %1289 = vmatmul.bf16.gmra.mxu0 %v1001
      %v1290 = vpop.f32.mrf.mxu0
      %v1291 = vadd.f32 %v1242, %v1290
      %v1292 = vpop.f32.mrf.mxu0
      %v1293 = vadd.f32 %v1244, %v1292
      %1294 = vmatmul.bf16.gmra.mxu0 %v1004
      %v1295 = vpop.f32.mrf.mxu0
      %v1296 = vadd.f32 %v1247, %v1295
      %v1297 = vpop.f32.mrf.mxu0
      %v1298 = vadd.f32 %v1249, %v1297
      %1299 = vdwg.mxu0
      %1300 = vmatpush.bf16.msra.mxu0 %v1177
      %1301 = vmatpush.bf16.msra.mxu0 %v1176
      %1302 = vmatpush.bf16.msra.mxu0 %v1175
      %1303 = vmatpush.bf16.msra.mxu0 %v1174
      %1304 = vmatpush.bf16.msra.mxu0 %v1173
      %1305 = vmatpush.bf16.msra.mxu0 %v1172
      %1306 = vmatpush.bf16.msra.mxu0 %v1171
      %1307 = vmatpush.bf16.msra.mxu0 %v1170
      %1308 = vmatmul.bf16.gmra.mxu0 %v984
      %v1309 = vpop.f32.mrf.mxu0
      %v1310 = vadd.f32 %v1261, %v1309
      %v1311 = vpop.f32.mrf.mxu0
      %v1312 = vadd.f32 %v1263, %v1311
      %1313 = vmatmul.bf16.gmra.mxu0 %v987
      %v1314 = vpop.f32.mrf.mxu0
      %v1315 = vadd.f32 %v1266, %v1314
      %v1316 = vpop.f32.mrf.mxu0
      %v1317 = vadd.f32 %v1268, %v1316
      %1318 = vmatmul.bf16.gmra.mxu0 %v990
      %v1319 = vpop.f32.mrf.mxu0
      %v1320 = vadd.f32 %v1271, %v1319
      %v1321 = vpop.f32.mrf.mxu0
      %v1322 = vadd.f32 %v1273, %v1321
      %1323 = vmatmul.bf16.gmra.mxu0 %v993
      %v1324 = vpop.f32.mrf.mxu0
      %v1325 = vadd.f32 %v1276, %v1324
      %v1326 = vpop.f32.mrf.mxu0
      %v1327 = vadd.f32 %v1278, %v1326
      %1328 = vmatmul.bf16.gmra.mxu0 %v996
      %v1329 = vpop.f32.mrf.mxu0
      %v1330 = vadd.f32 %v1281, %v1329
      %v1331 = vpop.f32.mrf.mxu0
      %v1332 = vadd.f32 %v1283, %v1331
      %1333 = vmatmul.bf16.gmra.mxu0 %v999
      %v1334 = vpop.f32.mrf.mxu0
      %v1335 = vadd.f32 %v1286, %v1334
      %v1336 = vpop.f32.mrf.mxu0
      %v1337 = vadd.f32 %v1288, %v1336
      %1338 = vmatmul.bf16.gmra.mxu0 %v1002
      %v1339 = vpop.f32.mrf.mxu0
      %v1340 = vadd.f32 %v1291, %v1339
      %v1341 = vpop.f32.mrf.mxu0
      %v1342 = vadd.f32 %v1293, %v1341
      %1343 = vmatmul.bf16.gmra.mxu0 %v1005
      %v1344 = vpop.f32.mrf.mxu0
      %v1345 = vadd.f32 %v1296, %v1344
      %v1346 = vpop.f32.mrf.mxu0
      %v1347 = vadd.f32 %v1298, %v1346
      %1348 = vdwg.mxu0
      %v1349 = vadd.f32 %v1310, %v293
      %v1350 = vadd.f32 %v1312, %v294
      %v1351 = vadd.f32 %v1315, %v295
      %v1352 = vadd.f32 %v1317, %v296
      %v1353 = vadd.f32 %v1320, %v297
      %v1354 = vadd.f32 %v1322, %v298
      %v1355 = vadd.f32 %v1325, %v299
      %v1356 = vadd.f32 %v1327, %v300
      %v1357 = vadd.f32 %v1330, %v301
      %v1358 = vadd.f32 %v1332, %v302
      %v1359 = vadd.f32 %v1335, %v303
      %v1360 = vadd.f32 %v1337, %v304
      %v1361 = vadd.f32 %v1340, %v305
      %v1362 = vadd.f32 %v1342, %v306
      %v1363 = vadd.f32 %v1345, %v307
      %v1364 = vadd.f32 %v1347, %v308
      %v1365 = vmax.f32 %v1349, 0.0
      %v1366 = vmax.f32 %v1350, 0.0
      %v1367 = vmax.f32 %v1351, 0.0
      %v1368 = vmax.f32 %v1352, 0.0
      %v1369 = vmax.f32 %v1353, 0.0
      %v1370 = vmax.f32 %v1354, 0.0
      %v1371 = vmax.f32 %v1355, 0.0
      %v1372 = vmax.f32 %v1356, 0.0
      %v1373 = vmax.f32 %v1357, 0.0
      %v1374 = vmax.f32 %v1358, 0.0
      %v1375 = vmax.f32 %v1359, 0.0
      %v1376 = vmax.f32 %v1360, 0.0
      %v1377 = vmax.f32 %v1361, 0.0
      %v1378 = vmax.f32 %v1362, 0.0
      %v1379 = vmax.f32 %v1363, 0.0
      %v1380 = vmax.f32 %v1364, 0.0
      %1381 = vst [vmem:[%s226] sm:$0xff] %v1365
      %1382 = vst [vmem:[%s226 + $0x8] sm:$0xff] %v1366
      %1383 = vst [vmem:[%s226 + $0x10] sm:$0xff] %v1367
      %1384 = vst [vmem:[%s226 + $0x18] sm:$0xff] %v1368
      %1385 = vst [vmem:[%s226 + $0x20] sm:$0xff] %v1369
      %1386 = vst [vmem:[%s226 + $0x28] sm:$0xff] %v1370
      %1387 = vst [vmem:[%s226 + $0x30] sm:$0xff] %v1371
      %1388 = vst [vmem:[%s226 + $0x38] sm:$0xff] %v1372
      %1389 = vst [vmem:[%s226 + $0x40] sm:$0xff] %v1373
      %1390 = vst [vmem:[%s226 + $0x48] sm:$0xff] %v1374
      %1391 = vst [vmem:[%s226 + $0x50] sm:$0xff] %v1375
      %1392 = vst [vmem:[%s226 + $0x58] sm:$0xff] %v1376
      %1393 = vst [vmem:[%s226 + $0x60] sm:$0xff] %v1377
      %1394 = vst [vmem:[%s226 + $0x68] sm:$0xff] %v1378
      %1395 = vst [vmem:[%s226 + $0x70] sm:$0xff] %v1379
      %1396 = vst [vmem:[%s226 + $0x78] sm:$0xff] %v1380
      %s1397 = smul.u32 16, %s16
      %p1398 = scmp.lt.s32.totalorder %s1397, 31
      %s1399 = scalar_select %p1398, %s1397, 31
      %s1400 = smul.addr %s1399, 8
      %s1401 = scalar_lea.vmem %s5, %s1400
      // Predicated region
      $region41: #{basic_block_forward.1} parent=39 // pred_check
        %p1402 = pneg %p144
      $region42: #{basic_block_forward.1} parent=39 // pred_check_branch
        %1404 = sbr.rel (%p1402) target = $region44
      $region43: #{basic_block_forward.1} parent=39 // pred_region
        %s1405 = smul.u32 16, %s16
      $region44: #{basic_block_forward.1} parent=39 // pred_fallthru
        _
    $region40: #{basic_block_forward.1} parent=5 // pred_fallthru
      _
    %p1406 = scmp.le.s32.totalorder 2, %s11
    // Predicated region
    $region45: #{basic_block_forward.1} parent=5 // pred_check
      %p1407 = pneg %p1406
    $region46: #{basic_block_forward.1} parent=5 // pred_check_branch
      %1409 = sbr.rel (%p1407) target = $region48
    $region47: #{basic_block_forward.1} parent=5 // pred_region
      %s1410 = ssub.s32 %s11, 2
      // Predicated region
      $region49: #{basic_block_forward.1} parent=47 // pred_check
        %p1411 = pneg %p150
      $region50: #{basic_block_forward.1} parent=47 // pred_check_branch
        %1413 = sbr.rel (%p1411) target = $region52
      $region51: #{basic_block_forward.1} parent=47 // pred_region
        %s1414 = smul.u32 16, %s17
        %p1415 = scmp.lt.s32.totalorder %s1414, 31
        %s1416 = scalar_select %p1415, %s1414, 31
        %s1417 = smul.addr %s1416, 8
        %s1418 = scalar_lea.vmem %s5, %s1417
      $region52: #{basic_block_forward.1} parent=47 // pred_fallthru
        _
    $region48: #{basic_block_forward.1} parent=5 // pred_fallthru
      _
  $region6: #{basic_block_forward.1} parent=0 // loop_footer
    %s15 = sadd.s32 1, %s11
  $region7: #{basic_block_forward.1} parent=0 // loop_footer_branch
    %10 = sbr.rel target = $region3
  $region8: #{basic_block_forward.1} parent=0 // loop_exit
    _

</llo_original>
